<compile_context>
chip_gen: v5e
topology: v5e:2x2
jax: 0.10.0
libtpu: 0.0.40
codegen_flags: <defaults>
</compile_context>

<pallas_src>
import math

import jax
import jax.numpy as jnp
from jax.experimental import pallas as pl

# Model hyper-parameters (small, consistent with the module's __init__).
DIM = 32
NUM_HEADS = 4
FF_DIM = 64
HEAD_DIM = DIM // NUM_HEADS
LN_EPS = 1e-5


def transformer_block_kernel(
    x_ref,      # (B*S, D)     rows = flattened (batch, seq)
    xrep_ref,   # (B*H, S, D)  x replicated per head: xrep[b*H + h] = x[b]
    wq_ref,     # (B*H, D, hd) per-(batch,head) Q weights, 1/sqrt(hd) folded in
    bq_ref,     # (B*H, S, hd)
    wk_ref,     # (B*H, D, hd)
    bk_ref,     # (B*H, S, hd)
    wv_ref,     # (B*H, D, hd)
    bv_ref,     # (B*H, S, hd)
    wo_ref,     # (B*H, hd, D) per-head row-blocks of out_proj.weight.T
    bo_ref,     # (1, D)
    g1_ref,     # (1, D)
    be1_ref,    # (1, D)
    w1_ref,     # (D, FF)      ffn[0].weight.T
    bf1_ref,    # (1, FF)
    w2_ref,     # (FF, D)      ffn[2].weight.T
    bf2_ref,    # (1, D)
    g2_ref,     # (1, D)
    be2_ref,    # (1, D)
    o_ref,      # (B*S, D)
):
    f32 = jnp.float32
    x = x_ref[...]                  # (B*S, D)
    xr = xrep_ref[...]              # (B*H, S, D)
    S = xr.shape[1]
    H = NUM_HEADS
    B = x.shape[0] // S

    def bdot(a, b, ca, cb):
        # Batched matmul with a single leading batch dimension (MXU).
        return jax.lax.dot_general(
            a, b,
            dimension_numbers=(((ca,), (cb,)), ((0,), (0,))),
            preferred_element_type=f32,
        )

    # ---- Q/K/V projections, produced directly in (B*H, S, hd) layout ----
    q = bdot(xr, wq_ref[...], 2, 1) + bq_ref[...]          # scale already folded in
    k = bdot(xr, wk_ref[...], 2, 1) + bk_ref[...]
    v = bdot(xr, wv_ref[...], 2, 1) + bv_ref[...]

    # ---- Scaled-dot-product attention (softmax over keys) ----
    s = bdot(q, k, 2, 2)                                   # (B*H, S, S)
    s = s - jnp.max(s, axis=-1, keepdims=True)
    e = jnp.exp(s)
    p = e * pl.reciprocal(jnp.sum(e, axis=-1, keepdims=True), approx=True)
    ctx = bdot(p, v, 2, 1)                                 # (B*H, S, hd)

    # ---- Output projection: per-head partial projections summed over heads ----
    proj = bdot(ctx, wo_ref[...], 2, 1)                    # (B*H, S, D)
    rows = []
    for b in range(B):                                     # static, tiny (B=2)
        acc = proj[b * H]
        for h in range(1, H):
            acc = acc + proj[b * H + h]
        rows.append(acc)                                   # (S, D)
    attn = rows[0] if B == 1 else jnp.concatenate(rows, axis=0)   # (B*S, D)
    attn = attn + bo_ref[...]

    # ---- Residual + LayerNorm 1 (dropout = identity in eval) ----
    h1 = x + attn
    mu1 = jnp.mean(h1, axis=-1, keepdims=True)
    c1 = h1 - mu1
    var1 = jnp.mean(c1 * c1, axis=-1, keepdims=True)
    h1n = c1 * jax.lax.rsqrt(var1 + LN_EPS) * g1_ref[...] + be1_ref[...]

    # ---- FFN: Linear -> ReLU -> Linear (weights pre-transposed host-side) ----
    f = jnp.dot(h1n, w1_ref[...], preferred_element_type=f32) + bf1_ref[...]
    f = jnp.maximum(f, 0.0)
    f = jnp.dot(f, w2_ref[...], preferred_element_type=f32) + bf2_ref[...]

    # ---- Residual + LayerNorm 2 ----
    h2 = h1n + f
    mu2 = jnp.mean(h2, axis=-1, keepdims=True)
    c2 = h2 - mu2
    var2 = jnp.mean(c2 * c2, axis=-1, keepdims=True)
    o_ref[...] = c2 * jax.lax.rsqrt(var2 + LN_EPS) * g2_ref[...] + be2_ref[...]


def prepare_params(p, batch, seq):
    """One-time host-side weight preparation: transpose, regroup per head, fold scale."""
    D, H, hd = DIM, NUM_HEADS, HEAD_DIM
    scale = 1.0 / math.sqrt(hd)

    wqkv = p["wqkv"]                       # (3D, D) = PyTorch in_proj_weight ([q; k; v])
    bqkv = p["bqkv"].reshape(3 * D)

    def per_head(w, b, s):
        # y = x @ w.T + b ; head h owns output columns [h*hd, (h+1)*hd)
        wt = (w.T * s).reshape(D, H, hd)                             # (D, H, hd)
        w_h = jnp.transpose(wt, (1, 0, 2))                           # (H, D, hd)
        w_bh = jnp.tile(w_h, (batch, 1, 1))                          # (B*H, D, hd)
        b_h = (b * s).reshape(1, H, 1, hd)
        b_bh = jnp.broadcast_to(b_h, (batch, H, seq, hd)).reshape(batch * H, seq, hd)
        return w_bh, b_bh

    wq_bh, bq_bh = per_head(wqkv[:D],      bqkv[:D],      scale)
    wk_bh, bk_bh = per_head(wqkv[D:2 * D], bqkv[D:2 * D], 1.0)
    wv_bh, bv_bh = per_head(wqkv[2 * D:],  bqkv[2 * D:],  1.0)

    wo_t = p["wo"].T                                                 # (D, D)
    wo_bh = jnp.tile(wo_t.reshape(H, hd, D), (batch, 1, 1))          # (B*H, hd, D)

    return {
        "wq_bh": wq_bh, "bq_bh": bq_bh,
        "wk_bh": wk_bh, "bk_bh": bk_bh,
        "wv_bh": wv_bh, "bv_bh": bv_bh,
        "wo_bh": wo_bh, "bo": p["bo"],
        "g1": p["g1"], "be1": p["be1"],
        "w1_t": p["w1"].T, "bf1": p["bf1"],
        "w2_t": p["w2"].T, "bf2": p["bf2"],
        "g2": p["g2"], "be2": p["be2"],
    }


def transformer_block(x, prep):
    """x: (B, S, D) float32; prep: output of prepare_params(params, B, S)."""
    B, S, D = x.shape
    x2 = x.reshape(B * S, D)                      # rows = flattened (batch, seq)
    x_rep = jnp.repeat(x, NUM_HEADS, axis=0)      # (B*H, S, D): x_rep[b*H + h] = x[b]

    args = (
        x2, x_rep,
        prep["wq_bh"], prep["bq_bh"],
        prep["wk_bh"], prep["bk_bh"],
        prep["wv_bh"], prep["bv_bh"],
        prep["wo_bh"], prep["bo"],
        prep["g1"], prep["be1"],
        prep["w1_t"], prep["bf1"],
        prep["w2_t"], prep["bf2"],
        prep["g2"], prep["be2"],
    )

    out = pl.pallas_call(
        transformer_block_kernel,
        out_shape=jax.ShapeDtypeStruct((B * S, D), jnp.float32),
    )(*args)
    return out.reshape(B, S, D)


def init_params(key):
    """Deterministic synthetic parameters matching nn.MultiheadAttention / nn.Linear shapes."""
    keys = jax.random.split(key, 6)
    std = 0.02
    return {
        # nn.MultiheadAttention
        "wqkv": std * jax.random.normal(keys[0], (3 * DIM, DIM), jnp.float32),
        "bqkv": jnp.zeros((1, 3 * DIM), jnp.float32),
        "wo":   std * jax.random.normal(keys[1], (DIM, DIM), jnp.float32),
        "bo":   jnp.zeros((1, DIM), jnp.float32),
        # norm1
        "g1":   jnp.ones((1, DIM), jnp.float32),
        "be1":  jnp.zeros((1, DIM), jnp.float32),
        # ffn
        "w1":   std * jax.random.normal(keys[2], (FF_DIM, DIM), jnp.float32),
        "bf1":  0.01 * jax.random.normal(keys[3], (1, FF_DIM), jnp.float32),
        "w2":   std * jax.random.normal(keys[4], (DIM, FF_DIM), jnp.float32),
        "bf2":  0.01 * jax.random.normal(keys[5], (1, DIM), jnp.float32),
        # norm2
        "g2":   jnp.ones((1, DIM), jnp.float32),
        "be2":  jnp.zeros((1, DIM), jnp.float32),
    }


def reference_transformer_block(x, p):
    """Pure-JAX reference mirroring PyTorch semantics (dropout=identity)."""
    B, S, D = x.shape
    qkv = jnp.einsum("bsd,ed->bse", x, p["wqkv"]) + p["bqkv"][0]
    q, k, v = qkv[..., :D], qkv[..., D:2 * D], qkv[..., 2 * D:]

    def split_heads(t):  # (B, S, D) -> (B, H, S, hd)
        return t.reshape(B, S, NUM_HEADS, HEAD_DIM).transpose(0, 2, 1, 3)

    qh, kh, vh = split_heads(q), split_heads(k), split_heads(v)
    s = jnp.einsum("bhqd,bhkd->bhqk", qh, kh) / math.sqrt(HEAD_DIM)
    pattn = jax.nn.softmax(s, axis=-1)
    a = jnp.einsum("bhqk,bhkd->bhqd", pattn, vh).transpose(0, 2, 1, 3).reshape(B, S, D)
    attn_out = jnp.einsum("bsd,ed->bse", a, p["wo"]) + p["bo"][0]

    def ln(t, g, b):
        mu = jnp.mean(t, axis=-1, keepdims=True)
        var = jnp.mean((t - mu) ** 2, axis=-1, keepdims=True)
        return (t - mu) / jnp.sqrt(var + LN_EPS) * g[0] + b[0]

    h1 = ln(x + attn_out, p["g1"], p["be1"])
    f = jnp.maximum(jnp.einsum("bsd,fd->bsf", h1, p["w1"]) + p["bf1"][0], 0.0)
    f = jnp.einsum("bsf,df->bsd", f, p["w2"]) + p["bf2"][0]
    return ln(h1 + f, p["g2"], p["be2"])


if __name__ == "__main__":
    key = jax.random.PRNGKey(0)
    k_x, k_p = jax.random.split(key)

    B, S = 2, 8
    x = jax.random.normal(k_x, (B, S, DIM), jnp.float32)
    params = init_params(k_p)
    prep = prepare_params(params, batch=B, seq=S)   # host-side, done once

    out = jax.block_until_ready(transformer_block(x, prep))

    ref = reference_transformer_block(x, params)
    assert out.shape == (B, S, DIM)
    assert jnp.allclose(out, ref, atol=2e-3, rtol=2e-3), "kernel mismatch vs reference"

    print("KERNEL_OK")
</pallas_src>

<mosaic_0001>
module attributes {stable_mosaic.version = 11 : i64} {
  func.func @transformer_block_kernel(%arg0: memref<16x32xf32, #tpu.memory_space<vmem>>, %arg1: memref<8x8x32xf32, #tpu.memory_space<vmem>>, %arg2: memref<8x32x8xf32, #tpu.memory_space<vmem>>, %arg3: memref<8x8x8xf32, #tpu.memory_space<vmem>>, %arg4: memref<8x32x8xf32, #tpu.memory_space<vmem>>, %arg5: memref<8x8x8xf32, #tpu.memory_space<vmem>>, %arg6: memref<8x32x8xf32, #tpu.memory_space<vmem>>, %arg7: memref<8x8x8xf32, #tpu.memory_space<vmem>>, %arg8: memref<8x8x32xf32, #tpu.memory_space<vmem>>, %arg9: memref<1x32xf32, #tpu.memory_space<vmem>>, %arg10: memref<1x32xf32, #tpu.memory_space<vmem>>, %arg11: memref<1x32xf32, #tpu.memory_space<vmem>>, %arg12: memref<32x64xf32, #tpu.memory_space<vmem>>, %arg13: memref<1x64xf32, #tpu.memory_space<vmem>>, %arg14: memref<64x32xf32, #tpu.memory_space<vmem>>, %arg15: memref<1x32xf32, #tpu.memory_space<vmem>>, %arg16: memref<1x32xf32, #tpu.memory_space<vmem>>, %arg17: memref<1x32xf32, #tpu.memory_space<vmem>>, %arg18: memref<16x32xf32, #tpu.memory_space<vmem>>) attributes {dimension_semantics = [], scalar_prefetch = 0 : i64, scratch_operands = 0 : i64, tpu.core_type = #tpu.core_type<tc>} {
    %c0 = arith.constant 0 : index
    %c0_0 = arith.constant 0 : index
    %0 = vector.load %arg0[%c0, %c0_0] : memref<16x32xf32, #tpu.memory_space<vmem>>, vector<16x32xf32>
    %c0_1 = arith.constant 0 : index
    %c0_2 = arith.constant 0 : index
    %c0_3 = arith.constant 0 : index
    %1 = vector.load %arg1[%c0_1, %c0_2, %c0_3] : memref<8x8x32xf32, #tpu.memory_space<vmem>>, vector<8x8x32xf32>
    %c0_4 = arith.constant 0 : index
    %c0_5 = arith.constant 0 : index
    %c0_6 = arith.constant 0 : index
    %2 = vector.load %arg2[%c0_4, %c0_5, %c0_6] : memref<8x32x8xf32, #tpu.memory_space<vmem>>, vector<8x32x8xf32>
    %cst = arith.constant dense<0.000000e+00> : vector<8x8x8xf32>
    %3 = tpu.matmul %1, %2, %cst {dimension_numbers = #tpu.dot_dimension_numbers<[2], [1], [1], [2], [0, 0, 0, 1, 1, 2], [0], [0]>} : vector<8x8x32xf32>, vector<8x32x8xf32>, vector<8x8x8xf32> -> vector<8x8x8xf32>
    %c0_7 = arith.constant 0 : index
    %c0_8 = arith.constant 0 : index
    %c0_9 = arith.constant 0 : index
    %4 = vector.load %arg3[%c0_7, %c0_8, %c0_9] : memref<8x8x8xf32, #tpu.memory_space<vmem>>, vector<8x8x8xf32>
    %5 = arith.addf %3, %4 : vector<8x8x8xf32>
    %c0_10 = arith.constant 0 : index
    %c0_11 = arith.constant 0 : index
    %c0_12 = arith.constant 0 : index
    %6 = vector.load %arg4[%c0_10, %c0_11, %c0_12] : memref<8x32x8xf32, #tpu.memory_space<vmem>>, vector<8x32x8xf32>
    %cst_13 = arith.constant dense<0.000000e+00> : vector<8x8x8xf32>
    %7 = tpu.matmul %1, %6, %cst_13 {dimension_numbers = #tpu.dot_dimension_numbers<[2], [1], [1], [2], [0, 0, 0, 1, 1, 2], [0], [0]>} : vector<8x8x32xf32>, vector<8x32x8xf32>, vector<8x8x8xf32> -> vector<8x8x8xf32>
    %c0_14 = arith.constant 0 : index
    %c0_15 = arith.constant 0 : index
    %c0_16 = arith.constant 0 : index
    %8 = vector.load %arg5[%c0_14, %c0_15, %c0_16] : memref<8x8x8xf32, #tpu.memory_space<vmem>>, vector<8x8x8xf32>
    %9 = arith.addf %7, %8 : vector<8x8x8xf32>
    %c0_17 = arith.constant 0 : index
    %c0_18 = arith.constant 0 : index
    %c0_19 = arith.constant 0 : index
    %10 = vector.load %arg6[%c0_17, %c0_18, %c0_19] : memref<8x32x8xf32, #tpu.memory_space<vmem>>, vector<8x32x8xf32>
    %cst_20 = arith.constant dense<0.000000e+00> : vector<8x8x8xf32>
    %11 = tpu.matmul %1, %10, %cst_20 {dimension_numbers = #tpu.dot_dimension_numbers<[2], [1], [1], [2], [0, 0, 0, 1, 1, 2], [0], [0]>} : vector<8x8x32xf32>, vector<8x32x8xf32>, vector<8x8x8xf32> -> vector<8x8x8xf32>
    %c0_21 = arith.constant 0 : index
    %c0_22 = arith.constant 0 : index
    %c0_23 = arith.constant 0 : index
    %12 = vector.load %arg7[%c0_21, %c0_22, %c0_23] : memref<8x8x8xf32, #tpu.memory_space<vmem>>, vector<8x8x8xf32>
    %13 = arith.addf %11, %12 : vector<8x8x8xf32>
    %cst_24 = arith.constant dense<0.000000e+00> : vector<8x8x8xf32>
    %14 = tpu.matmul %5, %9, %cst_24 {dimension_numbers = #tpu.dot_dimension_numbers<[2], [2], [1], [1], [0, 0, 0, 1, 1, 1], [0], [0]>} : vector<8x8x8xf32>, vector<8x8x8xf32>, vector<8x8x8xf32> -> vector<8x8x8xf32>
    %cst_25 = arith.constant dense<0xFF800000> : vector<8x8xf32>
    %15 = vector.multi_reduction <maximumf>, %14, %cst_25 [2] : vector<8x8x8xf32> to vector<8x8xf32>
    %16 = vector.shape_cast %15 : vector<8x8xf32> to vector<8x8x1xf32>
    %17 = vector.broadcast %16 : vector<8x8x1xf32> to vector<8x8x8xf32>
    %18 = arith.subf %14, %17 : vector<8x8x8xf32>
    %19 = math.exp %18 : vector<8x8x8xf32>
    %cst_26 = arith.constant dense<0.000000e+00> : vector<8x8xf32>
    %20 = vector.multi_reduction <add>, %19, %cst_26 [2] : vector<8x8x8xf32> to vector<8x8xf32>
    %21 = vector.shape_cast %20 : vector<8x8xf32> to vector<8x8x1xf32>
    %22 = tpu.reciprocal %21 {approx = true} : vector<8x8x1xf32> -> vector<8x8x1xf32>
    %23 = vector.broadcast %22 : vector<8x8x1xf32> to vector<8x8x8xf32>
    %24 = arith.mulf %19, %23 : vector<8x8x8xf32>
    %cst_27 = arith.constant dense<0.000000e+00> : vector<8x8x8xf32>
    %25 = tpu.matmul %24, %13, %cst_27 {dimension_numbers = #tpu.dot_dimension_numbers<[2], [1], [1], [2], [0, 0, 0, 1, 1, 2], [0], [0]>} : vector<8x8x8xf32>, vector<8x8x8xf32>, vector<8x8x8xf32> -> vector<8x8x8xf32>
    %c0_28 = arith.constant 0 : index
    %c0_29 = arith.constant 0 : index
    %c0_30 = arith.constant 0 : index
    %26 = vector.load %arg8[%c0_28, %c0_29, %c0_30] : memref<8x8x32xf32, #tpu.memory_space<vmem>>, vector<8x8x32xf32>
    %cst_31 = arith.constant dense<0.000000e+00> : vector<8x8x32xf32>
    %27 = tpu.matmul %25, %26, %cst_31 {dimension_numbers = #tpu.dot_dimension_numbers<[2], [1], [1], [2], [0, 0, 0, 1, 1, 2], [0], [0]>} : vector<8x8x8xf32>, vector<8x8x32xf32>, vector<8x8x32xf32> -> vector<8x8x32xf32>
    %28 = vector.extract_strided_slice %27 {offsets = [0, 0, 0], sizes = [1, 8, 32], strides = [1, 1, 1]} : vector<8x8x32xf32> to vector<1x8x32xf32>
    %29 = vector.shape_cast %28 : vector<1x8x32xf32> to vector<8x32xf32>
    %30 = vector.extract_strided_slice %27 {offsets = [1, 0, 0], sizes = [1, 8, 32], strides = [1, 1, 1]} : vector<8x8x32xf32> to vector<1x8x32xf32>
    %31 = vector.shape_cast %30 : vector<1x8x32xf32> to vector<8x32xf32>
    %32 = arith.addf %29, %31 : vector<8x32xf32>
    %33 = vector.extract_strided_slice %27 {offsets = [2, 0, 0], sizes = [1, 8, 32], strides = [1, 1, 1]} : vector<8x8x32xf32> to vector<1x8x32xf32>
    %34 = vector.shape_cast %33 : vector<1x8x32xf32> to vector<8x32xf32>
    %35 = arith.addf %32, %34 : vector<8x32xf32>
    %36 = vector.extract_strided_slice %27 {offsets = [3, 0, 0], sizes = [1, 8, 32], strides = [1, 1, 1]} : vector<8x8x32xf32> to vector<1x8x32xf32>
    %37 = vector.shape_cast %36 : vector<1x8x32xf32> to vector<8x32xf32>
    %38 = arith.addf %35, %37 : vector<8x32xf32>
    %39 = vector.extract_strided_slice %27 {offsets = [4, 0, 0], sizes = [1, 8, 32], strides = [1, 1, 1]} : vector<8x8x32xf32> to vector<1x8x32xf32>
    %40 = vector.shape_cast %39 : vector<1x8x32xf32> to vector<8x32xf32>
    %41 = vector.extract_strided_slice %27 {offsets = [5, 0, 0], sizes = [1, 8, 32], strides = [1, 1, 1]} : vector<8x8x32xf32> to vector<1x8x32xf32>
    %42 = vector.shape_cast %41 : vector<1x8x32xf32> to vector<8x32xf32>
    %43 = arith.addf %40, %42 : vector<8x32xf32>
    %44 = vector.extract_strided_slice %27 {offsets = [6, 0, 0], sizes = [1, 8, 32], strides = [1, 1, 1]} : vector<8x8x32xf32> to vector<1x8x32xf32>
    %45 = vector.shape_cast %44 : vector<1x8x32xf32> to vector<8x32xf32>
    %46 = arith.addf %43, %45 : vector<8x32xf32>
    %47 = vector.extract_strided_slice %27 {offsets = [7, 0, 0], sizes = [1, 8, 32], strides = [1, 1, 1]} : vector<8x8x32xf32> to vector<1x8x32xf32>
    %48 = vector.shape_cast %47 : vector<1x8x32xf32> to vector<8x32xf32>
    %49 = arith.addf %46, %48 : vector<8x32xf32>
    %50 = tpu.concatenate %38, %49 in 0 : vector<8x32xf32>, vector<8x32xf32> -> vector<16x32xf32>
    %c0_32 = arith.constant 0 : index
    %c0_33 = arith.constant 0 : index
    %51 = vector.load %arg9[%c0_32, %c0_33] : memref<1x32xf32, #tpu.memory_space<vmem>>, vector<1x32xf32>
    %52 = vector.broadcast %51 : vector<1x32xf32> to vector<16x32xf32>
    %53 = arith.addf %50, %52 : vector<16x32xf32>
    %54 = arith.addf %0, %53 : vector<16x32xf32>
    %cst_34 = arith.constant dense<0.000000e+00> : vector<16xf32>
    %55 = vector.multi_reduction <add>, %54, %cst_34 [1] : vector<16x32xf32> to vector<16xf32>
    %56 = vector.shape_cast %55 : vector<16xf32> to vector<16x1xf32>
    %cst_35 = arith.constant 3.200000e+01 : f32
    %57 = vector.broadcast %cst_35 : f32 to vector<16x1xf32>
    %58 = arith.divf %56, %57 : vector<16x1xf32>
    %59 = vector.broadcast %58 : vector<16x1xf32> to vector<16x32xf32>
    %60 = arith.subf %54, %59 : vector<16x32xf32>
    %61 = arith.mulf %60, %60 : vector<16x32xf32>
    %cst_36 = arith.constant dense<0.000000e+00> : vector<16xf32>
    %62 = vector.multi_reduction <add>, %61, %cst_36 [1] : vector<16x32xf32> to vector<16xf32>
    %63 = vector.shape_cast %62 : vector<16xf32> to vector<16x1xf32>
    %cst_37 = arith.constant 3.200000e+01 : f32
    %64 = vector.broadcast %cst_37 : f32 to vector<16x1xf32>
    %65 = arith.divf %63, %64 : vector<16x1xf32>
    %cst_38 = arith.constant 9.99999974E-6 : f32
    %66 = vector.broadcast %cst_38 : f32 to vector<16x1xf32>
    %67 = arith.addf %65, %66 : vector<16x1xf32>
    %68 = math.rsqrt %67 : vector<16x1xf32>
    %69 = vector.broadcast %68 : vector<16x1xf32> to vector<16x32xf32>
    %70 = arith.mulf %60, %69 : vector<16x32xf32>
    %c0_39 = arith.constant 0 : index
    %c0_40 = arith.constant 0 : index
    %71 = vector.load %arg10[%c0_39, %c0_40] : memref<1x32xf32, #tpu.memory_space<vmem>>, vector<1x32xf32>
    %72 = vector.broadcast %71 : vector<1x32xf32> to vector<16x32xf32>
    %73 = arith.mulf %70, %72 : vector<16x32xf32>
    %c0_41 = arith.constant 0 : index
    %c0_42 = arith.constant 0 : index
    %74 = vector.load %arg11[%c0_41, %c0_42] : memref<1x32xf32, #tpu.memory_space<vmem>>, vector<1x32xf32>
    %75 = vector.broadcast %74 : vector<1x32xf32> to vector<16x32xf32>
    %76 = arith.addf %73, %75 : vector<16x32xf32>
    %c0_43 = arith.constant 0 : index
    %c0_44 = arith.constant 0 : index
    %77 = vector.load %arg12[%c0_43, %c0_44] : memref<32x64xf32, #tpu.memory_space<vmem>>, vector<32x64xf32>
    %cst_45 = arith.constant dense<0.000000e+00> : vector<16x64xf32>
    %78 = tpu.matmul %76, %77, %cst_45 {dimension_numbers = #tpu.dot_dimension_numbers<[1], [0], [0], [1], [0, 0, 1, 1], [], []>} : vector<16x32xf32>, vector<32x64xf32>, vector<16x64xf32> -> vector<16x64xf32>
    %c0_46 = arith.constant 0 : index
    %c0_47 = arith.constant 0 : index
    %79 = vector.load %arg13[%c0_46, %c0_47] : memref<1x64xf32, #tpu.memory_space<vmem>>, vector<1x64xf32>
    %80 = vector.broadcast %79 : vector<1x64xf32> to vector<16x64xf32>
    %81 = arith.addf %78, %80 : vector<16x64xf32>
    %cst_48 = arith.constant 0.000000e+00 : f32
    %82 = vector.broadcast %cst_48 : f32 to vector<16x64xf32>
    %83 = arith.maximumf %81, %82 : vector<16x64xf32>
    %c0_49 = arith.constant 0 : index
    %c0_50 = arith.constant 0 : index
    %84 = vector.load %arg14[%c0_49, %c0_50] : memref<64x32xf32, #tpu.memory_space<vmem>>, vector<64x32xf32>
    %cst_51 = arith.constant dense<0.000000e+00> : vector<16x32xf32>
    %85 = tpu.matmul %83, %84, %cst_51 {dimension_numbers = #tpu.dot_dimension_numbers<[1], [0], [0], [1], [0, 0, 1, 1], [], []>} : vector<16x64xf32>, vector<64x32xf32>, vector<16x32xf32> -> vector<16x32xf32>
    %c0_52 = arith.constant 0 : index
    %c0_53 = arith.constant 0 : index
    %86 = vector.load %arg15[%c0_52, %c0_53] : memref<1x32xf32, #tpu.memory_space<vmem>>, vector<1x32xf32>
    %87 = vector.broadcast %86 : vector<1x32xf32> to vector<16x32xf32>
    %88 = arith.addf %85, %87 : vector<16x32xf32>
    %89 = arith.addf %76, %88 : vector<16x32xf32>
    %cst_54 = arith.constant dense<0.000000e+00> : vector<16xf32>
    %90 = vector.multi_reduction <add>, %89, %cst_54 [1] : vector<16x32xf32> to vector<16xf32>
    %91 = vector.shape_cast %90 : vector<16xf32> to vector<16x1xf32>
    %cst_55 = arith.constant 3.200000e+01 : f32
    %92 = vector.broadcast %cst_55 : f32 to vector<16x1xf32>
    %93 = arith.divf %91, %92 : vector<16x1xf32>
    %94 = vector.broadcast %93 : vector<16x1xf32> to vector<16x32xf32>
    %95 = arith.subf %89, %94 : vector<16x32xf32>
    %96 = arith.mulf %95, %95 : vector<16x32xf32>
    %cst_56 = arith.constant dense<0.000000e+00> : vector<16xf32>
    %97 = vector.multi_reduction <add>, %96, %cst_56 [1] : vector<16x32xf32> to vector<16xf32>
    %98 = vector.shape_cast %97 : vector<16xf32> to vector<16x1xf32>
    %cst_57 = arith.constant 3.200000e+01 : f32
    %99 = vector.broadcast %cst_57 : f32 to vector<16x1xf32>
    %100 = arith.divf %98, %99 : vector<16x1xf32>
    %cst_58 = arith.constant 9.99999974E-6 : f32
    %101 = vector.broadcast %cst_58 : f32 to vector<16x1xf32>
    %102 = arith.addf %100, %101 : vector<16x1xf32>
    %103 = math.rsqrt %102 : vector<16x1xf32>
    %104 = vector.broadcast %103 : vector<16x1xf32> to vector<16x32xf32>
    %105 = arith.mulf %95, %104 : vector<16x32xf32>
    %c0_59 = arith.constant 0 : index
    %c0_60 = arith.constant 0 : index
    %106 = vector.load %arg16[%c0_59, %c0_60] : memref<1x32xf32, #tpu.memory_space<vmem>>, vector<1x32xf32>
    %107 = vector.broadcast %106 : vector<1x32xf32> to vector<16x32xf32>
    %108 = arith.mulf %105, %107 : vector<16x32xf32>
    %c0_61 = arith.constant 0 : index
    %c0_62 = arith.constant 0 : index
    %109 = vector.load %arg17[%c0_61, %c0_62] : memref<1x32xf32, #tpu.memory_space<vmem>>, vector<1x32xf32>
    %110 = vector.broadcast %109 : vector<1x32xf32> to vector<16x32xf32>
    %111 = arith.addf %108, %110 : vector<16x32xf32>
    %c0_63 = arith.constant 0 : index
    %c0_64 = arith.constant 0 : index
    %112 = vector.load %arg18[%c0_63, %c0_64] : memref<16x32xf32, #tpu.memory_space<vmem>>, vector<16x32xf32>
    tpu.vector_store %arg18[%c0_63, %c0_64], %111 {strides = array<i32>} : memref<16x32xf32, #tpu.memory_space<vmem>>, vector<16x32xf32>,
    return
  }
}

</mosaic_0001>

<llo_original>
// kernel: tpu_custom_call.1
$region0: #{tpu_custom_call.1}
  #allocation0 [shape = 'u32[]', space=smem, size = 0x4, offset = 0x4, fixed_abs, tag = 'smem constant byte address 0x4 - core index']
  #allocation1 [shape = 'u32[72,128]{1,0:T(1,128)}', space=vmem, size = 0x9000, scoped, tag = 'internal scratch']
  %s0 = inlined_call_operand.vmem [shape: f32[16,32], index: 0, kind: input, shape index: {}]
  %s1 = inlined_call_operand.vmem [shape: f32[8,8,32], index: 1, kind: input, shape index: {}]
  %s2 = inlined_call_operand.vmem [shape: f32[8,32,8], index: 2, kind: input, shape index: {}]
  %s3 = inlined_call_operand.vmem [shape: f32[8,8,8], index: 3, kind: input, shape index: {}]
  %s4 = inlined_call_operand.vmem [shape: f32[8,32,8], index: 4, kind: input, shape index: {}]
  %s5 = inlined_call_operand.vmem [shape: f32[8,8,8], index: 5, kind: input, shape index: {}]
  %s6 = inlined_call_operand.vmem [shape: f32[8,32,8], index: 6, kind: input, shape index: {}]
  %s7 = inlined_call_operand.vmem [shape: f32[8,8,8], index: 7, kind: input, shape index: {}]
  %s8 = inlined_call_operand.vmem [shape: f32[8,8,32], index: 8, kind: input, shape index: {}]
  %s9 = inlined_call_operand.vmem [shape: f32[1,32], index: 9, kind: input, shape index: {}]
  %s10 = inlined_call_operand.vmem [shape: f32[1,32], index: 10, kind: input, shape index: {}]
  %s11 = inlined_call_operand.vmem [shape: f32[1,32], index: 11, kind: input, shape index: {}]
  %s12 = inlined_call_operand.vmem [shape: f32[32,64], index: 12, kind: input, shape index: {}]
  %s13 = inlined_call_operand.vmem [shape: f32[1,64], index: 13, kind: input, shape index: {}]
  %s14 = inlined_call_operand.vmem [shape: f32[64,32], index: 14, kind: input, shape index: {}]
  %s15 = inlined_call_operand.vmem [shape: f32[1,32], index: 15, kind: input, shape index: {}]
  %s16 = inlined_call_operand.vmem [shape: f32[1,32], index: 16, kind: input, shape index: {}]
  %s17 = inlined_call_operand.vmem [shape: f32[1,32], index: 17, kind: input, shape index: {}]
  %s18 = inlined_call_operand.hbm [shape: f32[16,32], index: 18, kind: output, shape index: {}]
  %s19 = sld [smem:[#allocation0]]
  $region82: #{tpu_custom_call.1} parent=0
    _
  %s21 = ssub.s32 1, %s19
  %s22 = scalar_select 0, %s21, %s19
  $region1: #{tpu_custom_call.1} parent=0
    #allocation2 [shape = 'u8[8192]{0}', space=vmem, size = 0x2000, scoped, tag = 'output window, operand 0, single buffered']
    #allocation3 [shape = 's32[1]{0}', space=sflag, size = 0x4, scoped, tag = 'scoped memory for tpu_custom_call.1']
    %23 = vsyncpa [#allocation3], 0
    // Predicated region
    $region2: #{tpu_custom_call.1} parent=1 // pred_check
      _
    $region3: #{tpu_custom_call.1} parent=1 // pred_check_branch
      %25 = sbr.rel (0) target = $region5
    $region4: #{tpu_custom_call.1} parent=1 // pred_region
      _
    $region5: #{tpu_custom_call.1} parent=1 // pred_fallthru
      _
    // Predicated region
    $region6: #{tpu_custom_call.1} parent=1 // pred_check
      _
    $region7: #{tpu_custom_call.1} parent=1 // pred_check_branch
      %27 = sbr.rel (0) target = $region9
    $region8: #{tpu_custom_call.1} parent=1 // pred_region
      _
    $region9: #{tpu_custom_call.1} parent=1 // pred_fallthru
      _
    // Predicated region
    $region10: #{tpu_custom_call.1} parent=1 // pred_check
      _
    $region11: #{tpu_custom_call.1} parent=1 // pred_check_branch
      %29 = sbr.rel (0) target = $region13
    $region12: #{tpu_custom_call.1} parent=1 // pred_region
      _
    $region13: #{tpu_custom_call.1} parent=1 // pred_fallthru
      _
    // Predicated region
    $region14: #{tpu_custom_call.1} parent=1 // pred_check
      _
    $region15: #{tpu_custom_call.1} parent=1 // pred_check_branch
      %31 = sbr.rel (0) target = $region17
    $region16: #{tpu_custom_call.1} parent=1 // pred_region
      _
    $region17: #{tpu_custom_call.1} parent=1 // pred_fallthru
      _
    // Predicated region
    $region18: #{tpu_custom_call.1} parent=1 // pred_check
      _
    $region19: #{tpu_custom_call.1} parent=1 // pred_check_branch
      %33 = sbr.rel (0) target = $region21
    $region20: #{tpu_custom_call.1} parent=1 // pred_region
      _
    $region21: #{tpu_custom_call.1} parent=1 // pred_fallthru
      _
    // Predicated region
    $region22: #{tpu_custom_call.1} parent=1 // pred_check
      _
    $region23: #{tpu_custom_call.1} parent=1 // pred_check_branch
      %35 = sbr.rel (0) target = $region25
    $region24: #{tpu_custom_call.1} parent=1 // pred_region
      _
    $region25: #{tpu_custom_call.1} parent=1 // pred_fallthru
      _
    // Predicated region
    $region26: #{tpu_custom_call.1} parent=1 // pred_check
      _
    $region27: #{tpu_custom_call.1} parent=1 // pred_check_branch
      %37 = sbr.rel (0) target = $region29
    $region28: #{tpu_custom_call.1} parent=1 // pred_region
      _
    $region29: #{tpu_custom_call.1} parent=1 // pred_fallthru
      _
    // Predicated region
    $region30: #{tpu_custom_call.1} parent=1 // pred_check
      _
    $region31: #{tpu_custom_call.1} parent=1 // pred_check_branch
      %39 = sbr.rel (0) target = $region33
    $region32: #{tpu_custom_call.1} parent=1 // pred_region
      _
    $region33: #{tpu_custom_call.1} parent=1 // pred_fallthru
      _
    // Predicated region
    $region34: #{tpu_custom_call.1} parent=1 // pred_check
      _
    $region35: #{tpu_custom_call.1} parent=1 // pred_check_branch
      %41 = sbr.rel (0) target = $region37
    $region36: #{tpu_custom_call.1} parent=1 // pred_region
      _
    $region37: #{tpu_custom_call.1} parent=1 // pred_fallthru
      _
    // Predicated region
    $region38: #{tpu_custom_call.1} parent=1 // pred_check
      _
    $region39: #{tpu_custom_call.1} parent=1 // pred_check_branch
      %43 = sbr.rel (0) target = $region41
    $region40: #{tpu_custom_call.1} parent=1 // pred_region
      _
    $region41: #{tpu_custom_call.1} parent=1 // pred_fallthru
      _
    // Predicated region
    $region42: #{tpu_custom_call.1} parent=1 // pred_check
      _
    $region43: #{tpu_custom_call.1} parent=1 // pred_check_branch
      %45 = sbr.rel (0) target = $region45
    $region44: #{tpu_custom_call.1} parent=1 // pred_region
      _
    $region45: #{tpu_custom_call.1} parent=1 // pred_fallthru
      _
    // Predicated region
    $region46: #{tpu_custom_call.1} parent=1 // pred_check
      _
    $region47: #{tpu_custom_call.1} parent=1 // pred_check_branch
      %47 = sbr.rel (0) target = $region49
    $region48: #{tpu_custom_call.1} parent=1 // pred_region
      _
    $region49: #{tpu_custom_call.1} parent=1 // pred_fallthru
      _
    // Predicated region
    $region50: #{tpu_custom_call.1} parent=1 // pred_check
      _
    $region51: #{tpu_custom_call.1} parent=1 // pred_check_branch
      %49 = sbr.rel (0) target = $region53
    $region52: #{tpu_custom_call.1} parent=1 // pred_region
      _
    $region53: #{tpu_custom_call.1} parent=1 // pred_fallthru
      _
    // Predicated region
    $region54: #{tpu_custom_call.1} parent=1 // pred_check
      _
    $region55: #{tpu_custom_call.1} parent=1 // pred_check_branch
      %51 = sbr.rel (0) target = $region57
    $region56: #{tpu_custom_call.1} parent=1 // pred_region
      _
    $region57: #{tpu_custom_call.1} parent=1 // pred_fallthru
      _
    // Predicated region
    $region58: #{tpu_custom_call.1} parent=1 // pred_check
      _
    $region59: #{tpu_custom_call.1} parent=1 // pred_check_branch
      %53 = sbr.rel (0) target = $region61
    $region60: #{tpu_custom_call.1} parent=1 // pred_region
      _
    $region61: #{tpu_custom_call.1} parent=1 // pred_fallthru
      _
    // Predicated region
    $region62: #{tpu_custom_call.1} parent=1 // pred_check
      _
    $region63: #{tpu_custom_call.1} parent=1 // pred_check_branch
      %55 = sbr.rel (0) target = $region65
    $region64: #{tpu_custom_call.1} parent=1 // pred_region
      _
    $region65: #{tpu_custom_call.1} parent=1 // pred_fallthru
      _
    // Predicated region
    $region66: #{tpu_custom_call.1} parent=1 // pred_check
      _
    $region67: #{tpu_custom_call.1} parent=1 // pred_check_branch
      %57 = sbr.rel (0) target = $region69
    $region68: #{tpu_custom_call.1} parent=1 // pred_region
      _
    $region69: #{tpu_custom_call.1} parent=1 // pred_fallthru
      _
    // Predicated region
    $region70: #{tpu_custom_call.1} parent=1 // pred_check
      _
    $region71: #{tpu_custom_call.1} parent=1 // pred_check_branch
      %59 = sbr.rel (0) target = $region73
    $region72: #{tpu_custom_call.1} parent=1 // pred_region
      _
    $region73: #{tpu_custom_call.1} parent=1 // pred_fallthru
      _
    %v60 = vld [vmem:[%s0] sm:$0xff]
    %v61 = vld [vmem:[%s0 + $0x8] sm:$0xff]
    %v62 = vld [vmem:[%s1] sm:$0xff]
    %v63 = vld [vmem:[%s1 + $0x8] sm:$0xff]
    %v64 = vld [vmem:[%s1 + $0x10] sm:$0xff]
    %v65 = vld [vmem:[%s1 + $0x18] sm:$0xff]
    %v66 = vld [vmem:[%s1 + $0x20] sm:$0xff]
    %v67 = vld [vmem:[%s1 + $0x28] sm:$0xff]
    %v68 = vld [vmem:[%s1 + $0x30] sm:$0xff]
    %v69 = vld [vmem:[%s1 + $0x38] sm:$0xff]
    %v70 = vld [vmem:[%s2] sm:$0xff]
    %v71 = vld [vmem:[%s2 + $0x8] sm:$0xff]
    %v72 = vld [vmem:[%s2 + $0x10] sm:$0xff]
    %v73 = vld [vmem:[%s2 + $0x18] sm:$0xff]
    %v74 = vld [vmem:[%s2 + $0x20] sm:$0xff]
    %v75 = vld [vmem:[%s2 + $0x28] sm:$0xff]
    %v76 = vld [vmem:[%s2 + $0x30] sm:$0xff]
    %v77 = vld [vmem:[%s2 + $0x38] sm:$0xff]
    %v78 = vld [vmem:[%s2 + $0x40] sm:$0xff]
    %v79 = vld [vmem:[%s2 + $0x48] sm:$0xff]
    %v80 = vld [vmem:[%s2 + $0x50] sm:$0xff]
    %v81 = vld [vmem:[%s2 + $0x58] sm:$0xff]
    %v82 = vld [vmem:[%s2 + $0x60] sm:$0xff]
    %v83 = vld [vmem:[%s2 + $0x68] sm:$0xff]
    %v84 = vld [vmem:[%s2 + $0x70] sm:$0xff]
    %v85 = vld [vmem:[%s2 + $0x78] sm:$0xff]
    %v86 = vld [vmem:[%s2 + $0x80] sm:$0xff]
    %v87 = vld [vmem:[%s2 + $0x88] sm:$0xff]
    %v88 = vld [vmem:[%s2 + $0x90] sm:$0xff]
    %v89 = vld [vmem:[%s2 + $0x98] sm:$0xff]
    %v90 = vld [vmem:[%s2 + $0xa0] sm:$0xff]
    %v91 = vld [vmem:[%s2 + $0xa8] sm:$0xff]
    %v92 = vld [vmem:[%s2 + $0xb0] sm:$0xff]
    %v93 = vld [vmem:[%s2 + $0xb8] sm:$0xff]
    %v94 = vld [vmem:[%s2 + $0xc0] sm:$0xff]
    %v95 = vld [vmem:[%s2 + $0xc8] sm:$0xff]
    %v96 = vld [vmem:[%s2 + $0xd0] sm:$0xff]
    %v97 = vld [vmem:[%s2 + $0xd8] sm:$0xff]
    %v98 = vld [vmem:[%s2 + $0xe0] sm:$0xff]
    %v99 = vld [vmem:[%s2 + $0xe8] sm:$0xff]
    %v100 = vld [vmem:[%s2 + $0xf0] sm:$0xff]
    %v101 = vld [vmem:[%s2 + $0xf8] sm:$0xff]
    %v102 = vld [vmem:[%s3] sm:$0xff]
    %v103 = vld [vmem:[%s3 + $0x8] sm:$0xff]
    %v104 = vld [vmem:[%s3 + $0x10] sm:$0xff]
    %v105 = vld [vmem:[%s3 + $0x18] sm:$0xff]
    %v106 = vld [vmem:[%s3 + $0x20] sm:$0xff]
    %v107 = vld [vmem:[%s3 + $0x28] sm:$0xff]
    %v108 = vld [vmem:[%s3 + $0x30] sm:$0xff]
    %v109 = vld [vmem:[%s3 + $0x38] sm:$0xff]
    %vm110 = vcmask 261120
    %v112 = vsel %vm110, %v62, 0
    %114 = vmatpush.msra.mxu0 0.0
    %115 = vmatpush.msra.mxu0 0.0
    %116 = vmatpush.msra.mxu0 0.0
    %117 = vmatpush.msra.mxu0 0.0
    %118 = vmatpush.msra.mxu0 0.0
    %119 = vmatpush.msra.mxu0 0.0
    %120 = vmatpush.msra.mxu0 0.0
    %121 = vmatpush.msra.mxu0 0.0
    %122 = vmatpush.msra.mxu0 0.0
    %123 = vmatpush.msra.mxu0 0.0
    %124 = vmatpush.msra.mxu0 0.0
    %125 = vmatpush.msra.mxu0 0.0
    %126 = vmatpush.msra.mxu0 %v73
    %127 = vmatpush.msra.mxu0 %v72
    %128 = vmatpush.msra.mxu0 %v71
    %129 = vmatpush.msra.mxu0 %v70
    %130 = vmatmul.f32.gmra.mxu0 %v112
    %v131 = vpop.f32.mrf.mxu0
    %v132 = vadd.f32 %v102, %v131
    %133 = vdwg.mxu0
    %v135 = vsel %vm110, %v63, 0
    %137 = vmatpush.msra.mxu0 0.0
    %138 = vmatpush.msra.mxu0 0.0
    %139 = vmatpush.msra.mxu0 0.0
    %140 = vmatpush.msra.mxu0 0.0
    %141 = vmatpush.msra.mxu0 0.0
    %142 = vmatpush.msra.mxu0 0.0
    %143 = vmatpush.msra.mxu0 0.0
    %144 = vmatpush.msra.mxu0 0.0
    %145 = vmatpush.msra.mxu0 0.0
    %146 = vmatpush.msra.mxu0 0.0
    %147 = vmatpush.msra.mxu0 0.0
    %148 = vmatpush.msra.mxu0 0.0
    %149 = vmatpush.msra.mxu0 %v77
    %150 = vmatpush.msra.mxu0 %v76
    %151 = vmatpush.msra.mxu0 %v75
    %152 = vmatpush.msra.mxu0 %v74
    %153 = vmatmul.f32.gmra.mxu0 %v135
    %v154 = vpop.f32.mrf.mxu0
    %v155 = vadd.f32 %v103, %v154
    %156 = vdwg.mxu0
    %v158 = vsel %vm110, %v64, 0
    %160 = vmatpush.msra.mxu0 0.0
    %161 = vmatpush.msra.mxu0 0.0
    %162 = vmatpush.msra.mxu0 0.0
    %163 = vmatpush.msra.mxu0 0.0
    %164 = vmatpush.msra.mxu0 0.0
    %165 = vmatpush.msra.mxu0 0.0
    %166 = vmatpush.msra.mxu0 0.0
    %167 = vmatpush.msra.mxu0 0.0
    %168 = vmatpush.msra.mxu0 0.0
    %169 = vmatpush.msra.mxu0 0.0
    %170 = vmatpush.msra.mxu0 0.0
    %171 = vmatpush.msra.mxu0 0.0
    %172 = vmatpush.msra.mxu0 %v81
    %173 = vmatpush.msra.mxu0 %v80
    %174 = vmatpush.msra.mxu0 %v79
    %175 = vmatpush.msra.mxu0 %v78
    %176 = vmatmul.f32.gmra.mxu0 %v158
    %v177 = vpop.f32.mrf.mxu0
    %v178 = vadd.f32 %v104, %v177
    %179 = vdwg.mxu0
    %v181 = vsel %vm110, %v65, 0
    %183 = vmatpush.msra.mxu0 0.0
    %184 = vmatpush.msra.mxu0 0.0
    %185 = vmatpush.msra.mxu0 0.0
    %186 = vmatpush.msra.mxu0 0.0
    %187 = vmatpush.msra.mxu0 0.0
    %188 = vmatpush.msra.mxu0 0.0
    %189 = vmatpush.msra.mxu0 0.0
    %190 = vmatpush.msra.mxu0 0.0
    %191 = vmatpush.msra.mxu0 0.0
    %192 = vmatpush.msra.mxu0 0.0
    %193 = vmatpush.msra.mxu0 0.0
    %194 = vmatpush.msra.mxu0 0.0
    %195 = vmatpush.msra.mxu0 %v85
    %196 = vmatpush.msra.mxu0 %v84
    %197 = vmatpush.msra.mxu0 %v83
    %198 = vmatpush.msra.mxu0 %v82
    %199 = vmatmul.f32.gmra.mxu0 %v181
    %v200 = vpop.f32.mrf.mxu0
    %v201 = vadd.f32 %v105, %v200
    %202 = vdwg.mxu0
    %v204 = vsel %vm110, %v66, 0
    %206 = vmatpush.msra.mxu0 0.0
    %207 = vmatpush.msra.mxu0 0.0
    %208 = vmatpush.msra.mxu0 0.0
    %209 = vmatpush.msra.mxu0 0.0
    %210 = vmatpush.msra.mxu0 0.0
    %211 = vmatpush.msra.mxu0 0.0
    %212 = vmatpush.msra.mxu0 0.0
    %213 = vmatpush.msra.mxu0 0.0
    %214 = vmatpush.msra.mxu0 0.0
    %215 = vmatpush.msra.mxu0 0.0
    %216 = vmatpush.msra.mxu0 0.0
    %217 = vmatpush.msra.mxu0 0.0
    %218 = vmatpush.msra.mxu0 %v89
    %219 = vmatpush.msra.mxu0 %v88
    %220 = vmatpush.msra.mxu0 %v87
    %221 = vmatpush.msra.mxu0 %v86
    %222 = vmatmul.f32.gmra.mxu0 %v204
    %v223 = vpop.f32.mrf.mxu0
    %v224 = vadd.f32 %v106, %v223
    %225 = vdwg.mxu0
    %v227 = vsel %vm110, %v67, 0
    %229 = vmatpush.msra.mxu0 0.0
    %230 = vmatpush.msra.mxu0 0.0
    %231 = vmatpush.msra.mxu0 0.0
    %232 = vmatpush.msra.mxu0 0.0
    %233 = vmatpush.msra.mxu0 0.0
    %234 = vmatpush.msra.mxu0 0.0
    %235 = vmatpush.msra.mxu0 0.0
    %236 = vmatpush.msra.mxu0 0.0
    %237 = vmatpush.msra.mxu0 0.0
    %238 = vmatpush.msra.mxu0 0.0
    %239 = vmatpush.msra.mxu0 0.0
    %240 = vmatpush.msra.mxu0 0.0
    %241 = vmatpush.msra.mxu0 %v93
    %242 = vmatpush.msra.mxu0 %v92
    %243 = vmatpush.msra.mxu0 %v91
    %244 = vmatpush.msra.mxu0 %v90
    %245 = vmatmul.f32.gmra.mxu0 %v227
    %v246 = vpop.f32.mrf.mxu0
    %v247 = vadd.f32 %v107, %v246
    %248 = vdwg.mxu0
    %v250 = vsel %vm110, %v68, 0
    %252 = vmatpush.msra.mxu0 0.0
    %253 = vmatpush.msra.mxu0 0.0
    %254 = vmatpush.msra.mxu0 0.0
    %255 = vmatpush.msra.mxu0 0.0
    %256 = vmatpush.msra.mxu0 0.0
    %257 = vmatpush.msra.mxu0 0.0
    %258 = vmatpush.msra.mxu0 0.0
    %259 = vmatpush.msra.mxu0 0.0
    %260 = vmatpush.msra.mxu0 0.0
    %261 = vmatpush.msra.mxu0 0.0
    %262 = vmatpush.msra.mxu0 0.0
    %263 = vmatpush.msra.mxu0 0.0
    %264 = vmatpush.msra.mxu0 %v97
    %265 = vmatpush.msra.mxu0 %v96
    %266 = vmatpush.msra.mxu0 %v95
    %267 = vmatpush.msra.mxu0 %v94
    %268 = vmatmul.f32.gmra.mxu0 %v250
    %v269 = vpop.f32.mrf.mxu0
    %v270 = vadd.f32 %v108, %v269
    %271 = vdwg.mxu0
    %v273 = vsel %vm110, %v69, 0
    %275 = vmatpush.msra.mxu0 0.0
    %276 = vmatpush.msra.mxu0 0.0
    %277 = vmatpush.msra.mxu0 0.0
    %278 = vmatpush.msra.mxu0 0.0
    %279 = vmatpush.msra.mxu0 0.0
    %280 = vmatpush.msra.mxu0 0.0
    %281 = vmatpush.msra.mxu0 0.0
    %282 = vmatpush.msra.mxu0 0.0
    %283 = vmatpush.msra.mxu0 0.0
    %284 = vmatpush.msra.mxu0 0.0
    %285 = vmatpush.msra.mxu0 0.0
    %286 = vmatpush.msra.mxu0 0.0
    %287 = vmatpush.msra.mxu0 %v101
    %288 = vmatpush.msra.mxu0 %v100
    %289 = vmatpush.msra.mxu0 %v99
    %290 = vmatpush.msra.mxu0 %v98
    %291 = vmatmul.f32.gmra.mxu0 %v273
    %v292 = vpop.f32.mrf.mxu0
    %v293 = vadd.f32 %v109, %v292
    %294 = vdwg.mxu0
    %v295 = vld [vmem:[%s4] sm:$0xff]
    %v296 = vld [vmem:[%s4 + $0x8] sm:$0xff]
    %v297 = vld [vmem:[%s4 + $0x10] sm:$0xff]
    %v298 = vld [vmem:[%s4 + $0x18] sm:$0xff]
    %v299 = vld [vmem:[%s4 + $0x20] sm:$0xff]
    %v300 = vld [vmem:[%s4 + $0x28] sm:$0xff]
    %v301 = vld [vmem:[%s4 + $0x30] sm:$0xff]
    %v302 = vld [vmem:[%s4 + $0x38] sm:$0xff]
    %v303 = vld [vmem:[%s4 + $0x40] sm:$0xff]
    %v304 = vld [vmem:[%s4 + $0x48] sm:$0xff]
    %v305 = vld [vmem:[%s4 + $0x50] sm:$0xff]
    %v306 = vld [vmem:[%s4 + $0x58] sm:$0xff]
    %v307 = vld [vmem:[%s4 + $0x60] sm:$0xff]
    %v308 = vld [vmem:[%s4 + $0x68] sm:$0xff]
    %v309 = vld [vmem:[%s4 + $0x70] sm:$0xff]
    %v310 = vld [vmem:[%s4 + $0x78] sm:$0xff]
    %v311 = vld [vmem:[%s4 + $0x80] sm:$0xff]
    %v312 = vld [vmem:[%s4 + $0x88] sm:$0xff]
    %v313 = vld [vmem:[%s4 + $0x90] sm:$0xff]
    %v314 = vld [vmem:[%s4 + $0x98] sm:$0xff]
    %v315 = vld [vmem:[%s4 + $0xa0] sm:$0xff]
    %v316 = vld [vmem:[%s4 + $0xa8] sm:$0xff]
    %v317 = vld [vmem:[%s4 + $0xb0] sm:$0xff]
    %v318 = vld [vmem:[%s4 + $0xb8] sm:$0xff]
    %v319 = vld [vmem:[%s4 + $0xc0] sm:$0xff]
    %v320 = vld [vmem:[%s4 + $0xc8] sm:$0xff]
    %v321 = vld [vmem:[%s4 + $0xd0] sm:$0xff]
    %v322 = vld [vmem:[%s4 + $0xd8] sm:$0xff]
    %v323 = vld [vmem:[%s4 + $0xe0] sm:$0xff]
    %v324 = vld [vmem:[%s4 + $0xe8] sm:$0xff]
    %v325 = vld [vmem:[%s4 + $0xf0] sm:$0xff]
    %v326 = vld [vmem:[%s4 + $0xf8] sm:$0xff]
    %v327 = vld [vmem:[%s5] sm:$0xff]
    %v328 = vld [vmem:[%s5 + $0x8] sm:$0xff]
    %v329 = vld [vmem:[%s5 + $0x10] sm:$0xff]
    %v330 = vld [vmem:[%s5 + $0x18] sm:$0xff]
    %v331 = vld [vmem:[%s5 + $0x20] sm:$0xff]
    %v332 = vld [vmem:[%s5 + $0x28] sm:$0xff]
    %v333 = vld [vmem:[%s5 + $0x30] sm:$0xff]
    %v334 = vld [vmem:[%s5 + $0x38] sm:$0xff]
    %335 = vmatpush.msra.mxu0 0.0
    %336 = vmatpush.msra.mxu0 0.0
    %337 = vmatpush.msra.mxu0 0.0
    %338 = vmatpush.msra.mxu0 0.0
    %339 = vmatpush.msra.mxu0 0.0
    %340 = vmatpush.msra.mxu0 0.0
    %341 = vmatpush.msra.mxu0 0.0
    %342 = vmatpush.msra.mxu0 0.0
    %343 = vmatpush.msra.mxu0 0.0
    %344 = vmatpush.msra.mxu0 0.0
    %345 = vmatpush.msra.mxu0 0.0
    %346 = vmatpush.msra.mxu0 0.0
    %347 = vmatpush.msra.mxu0 %v298
    %348 = vmatpush.msra.mxu0 %v297
    %349 = vmatpush.msra.mxu0 %v296
    %350 = vmatpush.msra.mxu0 %v295
    %351 = vmatmul.f32.gmra.mxu0 %v112
    %v352 = vpop.f32.mrf.mxu0
    %v353 = vadd.f32 %v327, %v352
    %354 = vdwg.mxu0
    %355 = vmatpush.msra.mxu0 0.0
    %356 = vmatpush.msra.mxu0 0.0
    %357 = vmatpush.msra.mxu0 0.0
    %358 = vmatpush.msra.mxu0 0.0
    %359 = vmatpush.msra.mxu0 0.0
    %360 = vmatpush.msra.mxu0 0.0
    %361 = vmatpush.msra.mxu0 0.0
    %362 = vmatpush.msra.mxu0 0.0
    %363 = vmatpush.msra.mxu0 0.0
    %364 = vmatpush.msra.mxu0 0.0
    %365 = vmatpush.msra.mxu0 0.0
    %366 = vmatpush.msra.mxu0 0.0
    %367 = vmatpush.msra.mxu0 %v302
    %368 = vmatpush.msra.mxu0 %v301
    %369 = vmatpush.msra.mxu0 %v300
    %370 = vmatpush.msra.mxu0 %v299
    %371 = vmatmul.f32.gmra.mxu0 %v135
    %v372 = vpop.f32.mrf.mxu0
    %v373 = vadd.f32 %v328, %v372
    %374 = vdwg.mxu0
    %375 = vmatpush.msra.mxu0 0.0
    %376 = vmatpush.msra.mxu0 0.0
    %377 = vmatpush.msra.mxu0 0.0
    %378 = vmatpush.msra.mxu0 0.0
    %379 = vmatpush.msra.mxu0 0.0
    %380 = vmatpush.msra.mxu0 0.0
    %381 = vmatpush.msra.mxu0 0.0
    %382 = vmatpush.msra.mxu0 0.0
    %383 = vmatpush.msra.mxu0 0.0
    %384 = vmatpush.msra.mxu0 0.0
    %385 = vmatpush.msra.mxu0 0.0
    %386 = vmatpush.msra.mxu0 0.0
    %387 = vmatpush.msra.mxu0 %v306
    %388 = vmatpush.msra.mxu0 %v305
    %389 = vmatpush.msra.mxu0 %v304
    %390 = vmatpush.msra.mxu0 %v303
    %391 = vmatmul.f32.gmra.mxu0 %v158
    %v392 = vpop.f32.mrf.mxu0
    %v393 = vadd.f32 %v329, %v392
    %394 = vdwg.mxu0
    %395 = vmatpush.msra.mxu0 0.0
    %396 = vmatpush.msra.mxu0 0.0
    %397 = vmatpush.msra.mxu0 0.0
    %398 = vmatpush.msra.mxu0 0.0
    %399 = vmatpush.msra.mxu0 0.0
    %400 = vmatpush.msra.mxu0 0.0
    %401 = vmatpush.msra.mxu0 0.0
    %402 = vmatpush.msra.mxu0 0.0
    %403 = vmatpush.msra.mxu0 0.0
    %404 = vmatpush.msra.mxu0 0.0
    %405 = vmatpush.msra.mxu0 0.0
    %406 = vmatpush.msra.mxu0 0.0
    %407 = vmatpush.msra.mxu0 %v310
    %408 = vmatpush.msra.mxu0 %v309
    %409 = vmatpush.msra.mxu0 %v308
    %410 = vmatpush.msra.mxu0 %v307
    %411 = vmatmul.f32.gmra.mxu0 %v181
    %v412 = vpop.f32.mrf.mxu0
    %v413 = vadd.f32 %v330, %v412
    %414 = vdwg.mxu0
    %415 = vmatpush.msra.mxu0 0.0
    %416 = vmatpush.msra.mxu0 0.0
    %417 = vmatpush.msra.mxu0 0.0
    %418 = vmatpush.msra.mxu0 0.0
    %419 = vmatpush.msra.mxu0 0.0
    %420 = vmatpush.msra.mxu0 0.0
    %421 = vmatpush.msra.mxu0 0.0
    %422 = vmatpush.msra.mxu0 0.0
    %423 = vmatpush.msra.mxu0 0.0
    %424 = vmatpush.msra.mxu0 0.0
    %425 = vmatpush.msra.mxu0 0.0
    %426 = vmatpush.msra.mxu0 0.0
    %427 = vmatpush.msra.mxu0 %v314
    %428 = vmatpush.msra.mxu0 %v313
    %429 = vmatpush.msra.mxu0 %v312
    %430 = vmatpush.msra.mxu0 %v311
    %431 = vmatmul.f32.gmra.mxu0 %v204
    %v432 = vpop.f32.mrf.mxu0
    %v433 = vadd.f32 %v331, %v432
    %434 = vdwg.mxu0
    %435 = vmatpush.msra.mxu0 0.0
    %436 = vmatpush.msra.mxu0 0.0
    %437 = vmatpush.msra.mxu0 0.0
    %438 = vmatpush.msra.mxu0 0.0
    %439 = vmatpush.msra.mxu0 0.0
    %440 = vmatpush.msra.mxu0 0.0
    %441 = vmatpush.msra.mxu0 0.0
    %442 = vmatpush.msra.mxu0 0.0
    %443 = vmatpush.msra.mxu0 0.0
    %444 = vmatpush.msra.mxu0 0.0
    %445 = vmatpush.msra.mxu0 0.0
    %446 = vmatpush.msra.mxu0 0.0
    %447 = vmatpush.msra.mxu0 %v318
    %448 = vmatpush.msra.mxu0 %v317
    %449 = vmatpush.msra.mxu0 %v316
    %450 = vmatpush.msra.mxu0 %v315
    %451 = vmatmul.f32.gmra.mxu0 %v227
    %v452 = vpop.f32.mrf.mxu0
    %v453 = vadd.f32 %v332, %v452
    %454 = vdwg.mxu0
    %455 = vmatpush.msra.mxu0 0.0
    %456 = vmatpush.msra.mxu0 0.0
    %457 = vmatpush.msra.mxu0 0.0
    %458 = vmatpush.msra.mxu0 0.0
    %459 = vmatpush.msra.mxu0 0.0
    %460 = vmatpush.msra.mxu0 0.0
    %461 = vmatpush.msra.mxu0 0.0
    %462 = vmatpush.msra.mxu0 0.0
    %463 = vmatpush.msra.mxu0 0.0
    %464 = vmatpush.msra.mxu0 0.0
    %465 = vmatpush.msra.mxu0 0.0
    %466 = vmatpush.msra.mxu0 0.0
    %467 = vmatpush.msra.mxu0 %v322
    %468 = vmatpush.msra.mxu0 %v321
    %469 = vmatpush.msra.mxu0 %v320
    %470 = vmatpush.msra.mxu0 %v319
    %471 = vmatmul.f32.gmra.mxu0 %v250
    %v472 = vpop.f32.mrf.mxu0
    %v473 = vadd.f32 %v333, %v472
    %474 = vdwg.mxu0
    %475 = vmatpush.msra.mxu0 0.0
    %476 = vmatpush.msra.mxu0 0.0
    %477 = vmatpush.msra.mxu0 0.0
    %478 = vmatpush.msra.mxu0 0.0
    %479 = vmatpush.msra.mxu0 0.0
    %480 = vmatpush.msra.mxu0 0.0
    %481 = vmatpush.msra.mxu0 0.0
    %482 = vmatpush.msra.mxu0 0.0
    %483 = vmatpush.msra.mxu0 0.0
    %484 = vmatpush.msra.mxu0 0.0
    %485 = vmatpush.msra.mxu0 0.0
    %486 = vmatpush.msra.mxu0 0.0
    %487 = vmatpush.msra.mxu0 %v326
    %488 = vmatpush.msra.mxu0 %v325
    %489 = vmatpush.msra.mxu0 %v324
    %490 = vmatpush.msra.mxu0 %v323
    %491 = vmatmul.f32.gmra.mxu0 %v273
    %v492 = vpop.f32.mrf.mxu0
    %v493 = vadd.f32 %v334, %v492
    %494 = vdwg.mxu0
    %v495 = vld [vmem:[%s6] sm:$0xff]
    %v496 = vld [vmem:[%s6 + $0x8] sm:$0xff]
    %v497 = vld [vmem:[%s6 + $0x10] sm:$0xff]
    %v498 = vld [vmem:[%s6 + $0x18] sm:$0xff]
    %v499 = vld [vmem:[%s6 + $0x20] sm:$0xff]
    %v500 = vld [vmem:[%s6 + $0x28] sm:$0xff]
    %v501 = vld [vmem:[%s6 + $0x30] sm:$0xff]
    %v502 = vld [vmem:[%s6 + $0x38] sm:$0xff]
    %v503 = vld [vmem:[%s6 + $0x40] sm:$0xff]
    %v504 = vld [vmem:[%s6 + $0x48] sm:$0xff]
    %v505 = vld [vmem:[%s6 + $0x50] sm:$0xff]
    %v506 = vld [vmem:[%s6 + $0x58] sm:$0xff]
    %v507 = vld [vmem:[%s6 + $0x60] sm:$0xff]
    %v508 = vld [vmem:[%s6 + $0x68] sm:$0xff]
    %v509 = vld [vmem:[%s6 + $0x70] sm:$0xff]
    %v510 = vld [vmem:[%s6 + $0x78] sm:$0xff]
    %v511 = vld [vmem:[%s6 + $0x80] sm:$0xff]
    %v512 = vld [vmem:[%s6 + $0x88] sm:$0xff]
    %v513 = vld [vmem:[%s6 + $0x90] sm:$0xff]
    %v514 = vld [vmem:[%s6 + $0x98] sm:$0xff]
    %v515 = vld [vmem:[%s6 + $0xa0] sm:$0xff]
    %v516 = vld [vmem:[%s6 + $0xa8] sm:$0xff]
    %v517 = vld [vmem:[%s6 + $0xb0] sm:$0xff]
    %v518 = vld [vmem:[%s6 + $0xb8] sm:$0xff]
    %v519 = vld [vmem:[%s6 + $0xc0] sm:$0xff]
    %v520 = vld [vmem:[%s6 + $0xc8] sm:$0xff]
    %v521 = vld [vmem:[%s6 + $0xd0] sm:$0xff]
    %v522 = vld [vmem:[%s6 + $0xd8] sm:$0xff]
    %v523 = vld [vmem:[%s6 + $0xe0] sm:$0xff]
    %v524 = vld [vmem:[%s6 + $0xe8] sm:$0xff]
    %v525 = vld [vmem:[%s6 + $0xf0] sm:$0xff]
    %v526 = vld [vmem:[%s6 + $0xf8] sm:$0xff]
    %v527 = vld [vmem:[%s7] sm:$0xff]
    %v528 = vld [vmem:[%s7 + $0x8] sm:$0xff]
    %v529 = vld [vmem:[%s7 + $0x10] sm:$0xff]
    %v530 = vld [vmem:[%s7 + $0x18] sm:$0xff]
    %v531 = vld [vmem:[%s7 + $0x20] sm:$0xff]
    %v532 = vld [vmem:[%s7 + $0x28] sm:$0xff]
    %v533 = vld [vmem:[%s7 + $0x30] sm:$0xff]
    %v534 = vld [vmem:[%s7 + $0x38] sm:$0xff]
    %535 = vmatpush.msra.mxu0 0.0
    %536 = vmatpush.msra.mxu0 0.0
    %537 = vmatpush.msra.mxu0 0.0
    %538 = vmatpush.msra.mxu0 0.0
    %539 = vmatpush.msra.mxu0 0.0
    %540 = vmatpush.msra.mxu0 0.0
    %541 = vmatpush.msra.mxu0 0.0
    %542 = vmatpush.msra.mxu0 0.0
    %543 = vmatpush.msra.mxu0 0.0
    %544 = vmatpush.msra.mxu0 0.0
    %545 = vmatpush.msra.mxu0 0.0
    %546 = vmatpush.msra.mxu0 0.0
    %547 = vmatpush.msra.mxu0 %v498
    %548 = vmatpush.msra.mxu0 %v497
    %549 = vmatpush.msra.mxu0 %v496
    %550 = vmatpush.msra.mxu0 %v495
    %551 = vmatmul.f32.gmra.mxu0 %v112
    %v552 = vpop.f32.mrf.mxu0
    %v553 = vadd.f32 %v527, %v552
    %554 = vdwg.mxu0
    %555 = vmatpush.msra.mxu0 0.0
    %556 = vmatpush.msra.mxu0 0.0
    %557 = vmatpush.msra.mxu0 0.0
    %558 = vmatpush.msra.mxu0 0.0
    %559 = vmatpush.msra.mxu0 0.0
    %560 = vmatpush.msra.mxu0 0.0
    %561 = vmatpush.msra.mxu0 0.0
    %562 = vmatpush.msra.mxu0 0.0
    %563 = vmatpush.msra.mxu0 0.0
    %564 = vmatpush.msra.mxu0 0.0
    %565 = vmatpush.msra.mxu0 0.0
    %566 = vmatpush.msra.mxu0 0.0
    %567 = vmatpush.msra.mxu0 %v502
    %568 = vmatpush.msra.mxu0 %v501
    %569 = vmatpush.msra.mxu0 %v500
    %570 = vmatpush.msra.mxu0 %v499
    %571 = vmatmul.f32.gmra.mxu0 %v135
    %v572 = vpop.f32.mrf.mxu0
    %v573 = vadd.f32 %v528, %v572
    %574 = vdwg.mxu0
    %575 = vmatpush.msra.mxu0 0.0
    %576 = vmatpush.msra.mxu0 0.0
    %577 = vmatpush.msra.mxu0 0.0
    %578 = vmatpush.msra.mxu0 0.0
    %579 = vmatpush.msra.mxu0 0.0
    %580 = vmatpush.msra.mxu0 0.0
    %581 = vmatpush.msra.mxu0 0.0
    %582 = vmatpush.msra.mxu0 0.0
    %583 = vmatpush.msra.mxu0 0.0
    %584 = vmatpush.msra.mxu0 0.0
    %585 = vmatpush.msra.mxu0 0.0
    %586 = vmatpush.msra.mxu0 0.0
    %587 = vmatpush.msra.mxu0 %v506
    %588 = vmatpush.msra.mxu0 %v505
    %589 = vmatpush.msra.mxu0 %v504
    %590 = vmatpush.msra.mxu0 %v503
    %591 = vmatmul.f32.gmra.mxu0 %v158
    %v592 = vpop.f32.mrf.mxu0
    %v593 = vadd.f32 %v529, %v592
    %594 = vdwg.mxu0
    %595 = vmatpush.msra.mxu0 0.0
    %596 = vmatpush.msra.mxu0 0.0
    %597 = vmatpush.msra.mxu0 0.0
    %598 = vmatpush.msra.mxu0 0.0
    %599 = vmatpush.msra.mxu0 0.0
    %600 = vmatpush.msra.mxu0 0.0
    %601 = vmatpush.msra.mxu0 0.0
    %602 = vmatpush.msra.mxu0 0.0
    %603 = vmatpush.msra.mxu0 0.0
    %604 = vmatpush.msra.mxu0 0.0
    %605 = vmatpush.msra.mxu0 0.0
    %606 = vmatpush.msra.mxu0 0.0
    %607 = vmatpush.msra.mxu0 %v510
    %608 = vmatpush.msra.mxu0 %v509
    %609 = vmatpush.msra.mxu0 %v508
    %610 = vmatpush.msra.mxu0 %v507
    %611 = vmatmul.f32.gmra.mxu0 %v181
    %v612 = vpop.f32.mrf.mxu0
    %v613 = vadd.f32 %v530, %v612
    %614 = vdwg.mxu0
    %615 = vmatpush.msra.mxu0 0.0
    %616 = vmatpush.msra.mxu0 0.0
    %617 = vmatpush.msra.mxu0 0.0
    %618 = vmatpush.msra.mxu0 0.0
    %619 = vmatpush.msra.mxu0 0.0
    %620 = vmatpush.msra.mxu0 0.0
    %621 = vmatpush.msra.mxu0 0.0
    %622 = vmatpush.msra.mxu0 0.0
    %623 = vmatpush.msra.mxu0 0.0
    %624 = vmatpush.msra.mxu0 0.0
    %625 = vmatpush.msra.mxu0 0.0
    %626 = vmatpush.msra.mxu0 0.0
    %627 = vmatpush.msra.mxu0 %v514
    %628 = vmatpush.msra.mxu0 %v513
    %629 = vmatpush.msra.mxu0 %v512
    %630 = vmatpush.msra.mxu0 %v511
    %631 = vmatmul.f32.gmra.mxu0 %v204
    %v632 = vpop.f32.mrf.mxu0
    %v633 = vadd.f32 %v531, %v632
    %634 = vdwg.mxu0
    %635 = vmatpush.msra.mxu0 0.0
    %636 = vmatpush.msra.mxu0 0.0
    %637 = vmatpush.msra.mxu0 0.0
    %638 = vmatpush.msra.mxu0 0.0
    %639 = vmatpush.msra.mxu0 0.0
    %640 = vmatpush.msra.mxu0 0.0
    %641 = vmatpush.msra.mxu0 0.0
    %642 = vmatpush.msra.mxu0 0.0
    %643 = vmatpush.msra.mxu0 0.0
    %644 = vmatpush.msra.mxu0 0.0
    %645 = vmatpush.msra.mxu0 0.0
    %646 = vmatpush.msra.mxu0 0.0
    %647 = vmatpush.msra.mxu0 %v518
    %648 = vmatpush.msra.mxu0 %v517
    %649 = vmatpush.msra.mxu0 %v516
    %650 = vmatpush.msra.mxu0 %v515
    %651 = vmatmul.f32.gmra.mxu0 %v227
    %v652 = vpop.f32.mrf.mxu0
    %v653 = vadd.f32 %v532, %v652
    %654 = vdwg.mxu0
    %655 = vmatpush.msra.mxu0 0.0
    %656 = vmatpush.msra.mxu0 0.0
    %657 = vmatpush.msra.mxu0 0.0
    %658 = vmatpush.msra.mxu0 0.0
    %659 = vmatpush.msra.mxu0 0.0
    %660 = vmatpush.msra.mxu0 0.0
    %661 = vmatpush.msra.mxu0 0.0
    %662 = vmatpush.msra.mxu0 0.0
    %663 = vmatpush.msra.mxu0 0.0
    %664 = vmatpush.msra.mxu0 0.0
    %665 = vmatpush.msra.mxu0 0.0
    %666 = vmatpush.msra.mxu0 0.0
    %667 = vmatpush.msra.mxu0 %v522
    %668 = vmatpush.msra.mxu0 %v521
    %669 = vmatpush.msra.mxu0 %v520
    %670 = vmatpush.msra.mxu0 %v519
    %671 = vmatmul.f32.gmra.mxu0 %v250
    %v672 = vpop.f32.mrf.mxu0
    %v673 = vadd.f32 %v533, %v672
    %674 = vdwg.mxu0
    %675 = vmatpush.msra.mxu0 0.0
    %676 = vmatpush.msra.mxu0 0.0
    %677 = vmatpush.msra.mxu0 0.0
    %678 = vmatpush.msra.mxu0 0.0
    %679 = vmatpush.msra.mxu0 0.0
    %680 = vmatpush.msra.mxu0 0.0
    %681 = vmatpush.msra.mxu0 0.0
    %682 = vmatpush.msra.mxu0 0.0
    %683 = vmatpush.msra.mxu0 0.0
    %684 = vmatpush.msra.mxu0 0.0
    %685 = vmatpush.msra.mxu0 0.0
    %686 = vmatpush.msra.mxu0 0.0
    %687 = vmatpush.msra.mxu0 %v526
    %688 = vmatpush.msra.mxu0 %v525
    %689 = vmatpush.msra.mxu0 %v524
    %690 = vmatpush.msra.mxu0 %v523
    %691 = vmatmul.f32.gmra.mxu0 %v273
    %v692 = vpop.f32.mrf.mxu0
    %v693 = vadd.f32 %v534, %v692
    %694 = vdwg.mxu0
    %vm695 = vcmask 64512
    %v697 = vsel %vm695, %v132, 0
    %v700 = vsel %vm695, %v353, 0
    %702 = vmatpush.xpose.msra.mxu0 0.0
    %703 = vmatpush.xpose.msra.mxu0 0.0
    %704 = vmatpush.xpose.msra.mxu0 0.0
    %705 = vmatpush.xpose.msra.mxu0 0.0
    %706 = vmatpush.xpose.msra.mxu0 0.0
    %707 = vmatpush.xpose.msra.mxu0 0.0
    %708 = vmatpush.xpose.msra.mxu0 0.0
    %709 = vmatpush.xpose.msra.mxu0 0.0
    %710 = vmatpush.xpose.msra.mxu0 0.0
    %711 = vmatpush.xpose.msra.mxu0 0.0
    %712 = vmatpush.xpose.msra.mxu0 0.0
    %713 = vmatpush.xpose.msra.mxu0 0.0
    %714 = vmatpush.xpose.msra.mxu0 0.0
    %715 = vmatpush.xpose.msra.mxu0 0.0
    %716 = vmatpush.xpose.msra.mxu0 0.0
    %717 = vmatpush.xpose.msra.mxu0 %v700
    %718 = vmatmul.f32.gmra.mxu0 %v697
    %v719 = vpop.f32.mrf.mxu0
    %v720 = vadd.f32 0.0, %v719
    %721 = vdwg.mxu0
    %v723 = vsel %vm695, %v155, 0
    %v726 = vsel %vm695, %v373, 0
    %728 = vmatpush.xpose.msra.mxu0 0.0
    %729 = vmatpush.xpose.msra.mxu0 0.0
    %730 = vmatpush.xpose.msra.mxu0 0.0
    %731 = vmatpush.xpose.msra.mxu0 0.0
    %732 = vmatpush.xpose.msra.mxu0 0.0
    %733 = vmatpush.xpose.msra.mxu0 0.0
    %734 = vmatpush.xpose.msra.mxu0 0.0
    %735 = vmatpush.xpose.msra.mxu0 0.0
    %736 = vmatpush.xpose.msra.mxu0 0.0
    %737 = vmatpush.xpose.msra.mxu0 0.0
    %738 = vmatpush.xpose.msra.mxu0 0.0
    %739 = vmatpush.xpose.msra.mxu0 0.0
    %740 = vmatpush.xpose.msra.mxu0 0.0
    %741 = vmatpush.xpose.msra.mxu0 0.0
    %742 = vmatpush.xpose.msra.mxu0 0.0
    %743 = vmatpush.xpose.msra.mxu0 %v726
    %744 = vmatmul.f32.gmra.mxu0 %v723
    %v745 = vpop.f32.mrf.mxu0
    %v746 = vadd.f32 0.0, %v745
    %747 = vdwg.mxu0
    %v749 = vsel %vm695, %v178, 0
    %v752 = vsel %vm695, %v393, 0
    %754 = vmatpush.xpose.msra.mxu0 0.0
    %755 = vmatpush.xpose.msra.mxu0 0.0
    %756 = vmatpush.xpose.msra.mxu0 0.0
    %757 = vmatpush.xpose.msra.mxu0 0.0
    %758 = vmatpush.xpose.msra.mxu0 0.0
    %759 = vmatpush.xpose.msra.mxu0 0.0
    %760 = vmatpush.xpose.msra.mxu0 0.0
    %761 = vmatpush.xpose.msra.mxu0 0.0
    %762 = vmatpush.xpose.msra.mxu0 0.0
    %763 = vmatpush.xpose.msra.mxu0 0.0
    %764 = vmatpush.xpose.msra.mxu0 0.0
    %765 = vmatpush.xpose.msra.mxu0 0.0
    %766 = vmatpush.xpose.msra.mxu0 0.0
    %767 = vmatpush.xpose.msra.mxu0 0.0
    %768 = vmatpush.xpose.msra.mxu0 0.0
    %769 = vmatpush.xpose.msra.mxu0 %v752
    %770 = vmatmul.f32.gmra.mxu0 %v749
    %v771 = vpop.f32.mrf.mxu0
    %v772 = vadd.f32 0.0, %v771
    %773 = vdwg.mxu0
    %v775 = vsel %vm695, %v201, 0
    %v778 = vsel %vm695, %v413, 0
    %780 = vmatpush.xpose.msra.mxu0 0.0
    %781 = vmatpush.xpose.msra.mxu0 0.0
    %782 = vmatpush.xpose.msra.mxu0 0.0
    %783 = vmatpush.xpose.msra.mxu0 0.0
    %784 = vmatpush.xpose.msra.mxu0 0.0
    %785 = vmatpush.xpose.msra.mxu0 0.0
    %786 = vmatpush.xpose.msra.mxu0 0.0
    %787 = vmatpush.xpose.msra.mxu0 0.0
    %788 = vmatpush.xpose.msra.mxu0 0.0
    %789 = vmatpush.xpose.msra.mxu0 0.0
    %790 = vmatpush.xpose.msra.mxu0 0.0
    %791 = vmatpush.xpose.msra.mxu0 0.0
    %792 = vmatpush.xpose.msra.mxu0 0.0
    %793 = vmatpush.xpose.msra.mxu0 0.0
    %794 = vmatpush.xpose.msra.mxu0 0.0
    %795 = vmatpush.xpose.msra.mxu0 %v778
    %796 = vmatmul.f32.gmra.mxu0 %v775
    %v797 = vpop.f32.mrf.mxu0
    %v798 = vadd.f32 0.0, %v797
    %799 = vdwg.mxu0
    %v801 = vsel %vm695, %v224, 0
    %v804 = vsel %vm695, %v433, 0
    %806 = vmatpush.xpose.msra.mxu0 0.0
    %807 = vmatpush.xpose.msra.mxu0 0.0
    %808 = vmatpush.xpose.msra.mxu0 0.0
    %809 = vmatpush.xpose.msra.mxu0 0.0
    %810 = vmatpush.xpose.msra.mxu0 0.0
    %811 = vmatpush.xpose.msra.mxu0 0.0
    %812 = vmatpush.xpose.msra.mxu0 0.0
    %813 = vmatpush.xpose.msra.mxu0 0.0
    %814 = vmatpush.xpose.msra.mxu0 0.0
    %815 = vmatpush.xpose.msra.mxu0 0.0
    %816 = vmatpush.xpose.msra.mxu0 0.0
    %817 = vmatpush.xpose.msra.mxu0 0.0
    %818 = vmatpush.xpose.msra.mxu0 0.0
    %819 = vmatpush.xpose.msra.mxu0 0.0
    %820 = vmatpush.xpose.msra.mxu0 0.0
    %821 = vmatpush.xpose.msra.mxu0 %v804
    %822 = vmatmul.f32.gmra.mxu0 %v801
    %v823 = vpop.f32.mrf.mxu0
    %v824 = vadd.f32 0.0, %v823
    %825 = vdwg.mxu0
    %v827 = vsel %vm695, %v247, 0
    %v830 = vsel %vm695, %v453, 0
    %832 = vmatpush.xpose.msra.mxu0 0.0
    %833 = vmatpush.xpose.msra.mxu0 0.0
    %834 = vmatpush.xpose.msra.mxu0 0.0
    %835 = vmatpush.xpose.msra.mxu0 0.0
    %836 = vmatpush.xpose.msra.mxu0 0.0
    %837 = vmatpush.xpose.msra.mxu0 0.0
    %838 = vmatpush.xpose.msra.mxu0 0.0
    %839 = vmatpush.xpose.msra.mxu0 0.0
    %840 = vmatpush.xpose.msra.mxu0 0.0
    %841 = vmatpush.xpose.msra.mxu0 0.0
    %842 = vmatpush.xpose.msra.mxu0 0.0
    %843 = vmatpush.xpose.msra.mxu0 0.0
    %844 = vmatpush.xpose.msra.mxu0 0.0
    %845 = vmatpush.xpose.msra.mxu0 0.0
    %846 = vmatpush.xpose.msra.mxu0 0.0
    %847 = vmatpush.xpose.msra.mxu0 %v830
    %848 = vmatmul.f32.gmra.mxu0 %v827
    %v849 = vpop.f32.mrf.mxu0
    %v850 = vadd.f32 0.0, %v849
    %851 = vdwg.mxu0
    %v853 = vsel %vm695, %v270, 0
    %v856 = vsel %vm695, %v473, 0
    %858 = vmatpush.xpose.msra.mxu0 0.0
    %859 = vmatpush.xpose.msra.mxu0 0.0
    %860 = vmatpush.xpose.msra.mxu0 0.0
    %861 = vmatpush.xpose.msra.mxu0 0.0
    %862 = vmatpush.xpose.msra.mxu0 0.0
    %863 = vmatpush.xpose.msra.mxu0 0.0
    %864 = vmatpush.xpose.msra.mxu0 0.0
    %865 = vmatpush.xpose.msra.mxu0 0.0
    %866 = vmatpush.xpose.msra.mxu0 0.0
    %867 = vmatpush.xpose.msra.mxu0 0.0
    %868 = vmatpush.xpose.msra.mxu0 0.0
    %869 = vmatpush.xpose.msra.mxu0 0.0
    %870 = vmatpush.xpose.msra.mxu0 0.0
    %871 = vmatpush.xpose.msra.mxu0 0.0
    %872 = vmatpush.xpose.msra.mxu0 0.0
    %873 = vmatpush.xpose.msra.mxu0 %v856
    %874 = vmatmul.f32.gmra.mxu0 %v853
    %v875 = vpop.f32.mrf.mxu0
    %v876 = vadd.f32 0.0, %v875
    %877 = vdwg.mxu0
    %v879 = vsel %vm695, %v293, 0
    %v882 = vsel %vm695, %v493, 0
    %884 = vmatpush.xpose.msra.mxu0 0.0
    %885 = vmatpush.xpose.msra.mxu0 0.0
    %886 = vmatpush.xpose.msra.mxu0 0.0
    %887 = vmatpush.xpose.msra.mxu0 0.0
    %888 = vmatpush.xpose.msra.mxu0 0.0
    %889 = vmatpush.xpose.msra.mxu0 0.0
    %890 = vmatpush.xpose.msra.mxu0 0.0
    %891 = vmatpush.xpose.msra.mxu0 0.0
    %892 = vmatpush.xpose.msra.mxu0 0.0
    %893 = vmatpush.xpose.msra.mxu0 0.0
    %894 = vmatpush.xpose.msra.mxu0 0.0
    %895 = vmatpush.xpose.msra.mxu0 0.0
    %896 = vmatpush.xpose.msra.mxu0 0.0
    %897 = vmatpush.xpose.msra.mxu0 0.0
    %898 = vmatpush.xpose.msra.mxu0 0.0
    %899 = vmatpush.xpose.msra.mxu0 %v882
    %900 = vmatmul.f32.gmra.mxu0 %v879
    %v901 = vpop.f32.mrf.mxu0
    %v902 = vadd.f32 0.0, %v901
    %903 = vdwg.mxu0
    %v904 = vsel %vm695, %v720, -inf
    %905 = vmax.xlane.f32.xlu0 %v904
    %v906 = vpop.xlane.xlu0 %905
    %v907 = vsel %vm695, %v746, -inf
    %908 = vmax.xlane.f32.xlu0 %v907
    %v909 = vpop.xlane.xlu0 %908
    %v910 = vsel %vm695, %v772, -inf
    %911 = vmax.xlane.f32.xlu0 %v910
    %v912 = vpop.xlane.xlu0 %911
    %v913 = vsel %vm695, %v798, -inf
    %914 = vmax.xlane.f32.xlu0 %v913
    %v915 = vpop.xlane.xlu0 %914
    %v916 = vsel %vm695, %v824, -inf
    %917 = vmax.xlane.f32.xlu0 %v916
    %v918 = vpop.xlane.xlu0 %917
    %v919 = vsel %vm695, %v850, -inf
    %920 = vmax.xlane.f32.xlu0 %v919
    %v921 = vpop.xlane.xlu0 %920
    %v922 = vsel %vm695, %v876, -inf
    %923 = vmax.xlane.f32.xlu0 %v922
    %v924 = vpop.xlane.xlu0 %923
    %v925 = vsel %vm695, %v902, -inf
    %926 = vmax.xlane.f32.xlu0 %v925
    %v927 = vpop.xlane.xlu0 %926
    %v928 = vsub.f32 %v720, %v906
    %v929 = vsub.f32 %v746, %v909
    %v930 = vsub.f32 %v772, %v912
    %v931 = vsub.f32 %v798, %v915
    %v932 = vsub.f32 %v824, %v918
    %v933 = vsub.f32 %v850, %v921
    %v934 = vsub.f32 %v876, %v924
    %v935 = vsub.f32 %v902, %v927
    %v936 = vmul.f32 %v928, 1.442695
    %v937 = vpow.pop %v936
    %v938 = vmul.f32 %v929, 1.442695
    %v939 = vpow.pop %v938
    %v940 = vmul.f32 %v930, 1.442695
    %v941 = vpow.pop %v940
    %v942 = vmul.f32 %v931, 1.442695
    %v943 = vpow.pop %v942
    %v944 = vmul.f32 %v932, 1.442695
    %v945 = vpow.pop %v944
    %v946 = vmul.f32 %v933, 1.442695
    %v947 = vpow.pop %v946
    %v948 = vmul.f32 %v934, 1.442695
    %v949 = vpow.pop %v948
    %v950 = vmul.f32 %v935, 1.442695
    %v951 = vpow.pop %v950
    %v952 = vsel %vm695, %v937, 0.0
    %953 = vadd.xlane.f32.xlu0 %v952
    %v954 = vpop.xlane.xlu0 %953
    %v955 = vsel %vm695, %v939, 0.0
    %956 = vadd.xlane.f32.xlu0 %v955
    %v957 = vpop.xlane.xlu0 %956
    %v958 = vsel %vm695, %v941, 0.0
    %959 = vadd.xlane.f32.xlu0 %v958
    %v960 = vpop.xlane.xlu0 %959
    %v961 = vsel %vm695, %v943, 0.0
    %962 = vadd.xlane.f32.xlu0 %v961
    %v963 = vpop.xlane.xlu0 %962
    %v964 = vsel %vm695, %v945, 0.0
    %965 = vadd.xlane.f32.xlu0 %v964
    %v966 = vpop.xlane.xlu0 %965
    %v967 = vsel %vm695, %v947, 0.0
    %968 = vadd.xlane.f32.xlu0 %v967
    %v969 = vpop.xlane.xlu0 %968
    %v970 = vsel %vm695, %v949, 0.0
    %971 = vadd.xlane.f32.xlu0 %v970
    %v972 = vpop.xlane.xlu0 %971
    %v973 = vsel %vm695, %v951, 0.0
    %974 = vadd.xlane.f32.xlu0 %v973
    %v975 = vpop.xlane.xlu0 %974
    %v976 = vrcp.pop %v954
    %v977 = vrcp.pop %v957
    %v978 = vrcp.pop %v960
    %v979 = vrcp.pop %v963
    %v980 = vrcp.pop %v966
    %v981 = vrcp.pop %v969
    %v982 = vrcp.pop %v972
    %v983 = vrcp.pop %v975
    %v984 = vmul.f32 %v937, %v976
    %v985 = vmul.f32 %v939, %v977
    %v986 = vmul.f32 %v941, %v978
    %v987 = vmul.f32 %v943, %v979
    %v988 = vmul.f32 %v945, %v980
    %v989 = vmul.f32 %v947, %v981
    %v990 = vmul.f32 %v949, %v982
    %v991 = vmul.f32 %v951, %v983
    %v993 = vsel %vm695, %v984, 0
    %995 = vmatpush.msra.mxu0 0.0
    %996 = vmatpush.msra.mxu0 0.0
    %997 = vmatpush.msra.mxu0 0.0
    %998 = vmatpush.msra.mxu0 0.0
    %999 = vmatpush.msra.mxu0 0.0
    %1000 = vmatpush.msra.mxu0 0.0
    %1001 = vmatpush.msra.mxu0 0.0
    %1002 = vmatpush.msra.mxu0 0.0
    %1003 = vmatpush.msra.mxu0 0.0
    %1004 = vmatpush.msra.mxu0 0.0
    %1005 = vmatpush.msra.mxu0 0.0
    %1006 = vmatpush.msra.mxu0 0.0
    %1007 = vmatpush.msra.mxu0 0.0
    %1008 = vmatpush.msra.mxu0 0.0
    %1009 = vmatpush.msra.mxu0 0.0
    %1010 = vmatpush.msra.mxu0 %v553
    %1011 = vmatmul.f32.gmra.mxu0 %v993
    %v1012 = vpop.f32.mrf.mxu0
    %v1013 = vadd.f32 0.0, %v1012
    %1014 = vdwg.mxu0
    %v1016 = vsel %vm695, %v985, 0
    %1018 = vmatpush.msra.mxu0 0.0
    %1019 = vmatpush.msra.mxu0 0.0
    %1020 = vmatpush.msra.mxu0 0.0
    %1021 = vmatpush.msra.mxu0 0.0
    %1022 = vmatpush.msra.mxu0 0.0
    %1023 = vmatpush.msra.mxu0 0.0
    %1024 = vmatpush.msra.mxu0 0.0
    %1025 = vmatpush.msra.mxu0 0.0
    %1026 = vmatpush.msra.mxu0 0.0
    %1027 = vmatpush.msra.mxu0 0.0
    %1028 = vmatpush.msra.mxu0 0.0
    %1029 = vmatpush.msra.mxu0 0.0
    %1030 = vmatpush.msra.mxu0 0.0
    %1031 = vmatpush.msra.mxu0 0.0
    %1032 = vmatpush.msra.mxu0 0.0
    %1033 = vmatpush.msra.mxu0 %v573
    %1034 = vmatmul.f32.gmra.mxu0 %v1016
    %v1035 = vpop.f32.mrf.mxu0
    %v1036 = vadd.f32 0.0, %v1035
    %1037 = vdwg.mxu0
    %v1039 = vsel %vm695, %v986, 0
    %1041 = vmatpush.msra.mxu0 0.0
    %1042 = vmatpush.msra.mxu0 0.0
    %1043 = vmatpush.msra.mxu0 0.0
    %1044 = vmatpush.msra.mxu0 0.0
    %1045 = vmatpush.msra.mxu0 0.0
    %1046 = vmatpush.msra.mxu0 0.0
    %1047 = vmatpush.msra.mxu0 0.0
    %1048 = vmatpush.msra.mxu0 0.0
    %1049 = vmatpush.msra.mxu0 0.0
    %1050 = vmatpush.msra.mxu0 0.0
    %1051 = vmatpush.msra.mxu0 0.0
    %1052 = vmatpush.msra.mxu0 0.0
    %1053 = vmatpush.msra.mxu0 0.0
    %1054 = vmatpush.msra.mxu0 0.0
    %1055 = vmatpush.msra.mxu0 0.0
    %1056 = vmatpush.msra.mxu0 %v593
    %1057 = vmatmul.f32.gmra.mxu0 %v1039
    %v1058 = vpop.f32.mrf.mxu0
    %v1059 = vadd.f32 0.0, %v1058
    %1060 = vdwg.mxu0
    %v1062 = vsel %vm695, %v987, 0
    %1064 = vmatpush.msra.mxu0 0.0
    %1065 = vmatpush.msra.mxu0 0.0
    %1066 = vmatpush.msra.mxu0 0.0
    %1067 = vmatpush.msra.mxu0 0.0
    %1068 = vmatpush.msra.mxu0 0.0
    %1069 = vmatpush.msra.mxu0 0.0
    %1070 = vmatpush.msra.mxu0 0.0
    %1071 = vmatpush.msra.mxu0 0.0
    %1072 = vmatpush.msra.mxu0 0.0
    %1073 = vmatpush.msra.mxu0 0.0
    %1074 = vmatpush.msra.mxu0 0.0
    %1075 = vmatpush.msra.mxu0 0.0
    %1076 = vmatpush.msra.mxu0 0.0
    %1077 = vmatpush.msra.mxu0 0.0
    %1078 = vmatpush.msra.mxu0 0.0
    %1079 = vmatpush.msra.mxu0 %v613
    %1080 = vmatmul.f32.gmra.mxu0 %v1062
    %v1081 = vpop.f32.mrf.mxu0
    %v1082 = vadd.f32 0.0, %v1081
    %1083 = vdwg.mxu0
    %v1085 = vsel %vm695, %v988, 0
    %1087 = vmatpush.msra.mxu0 0.0
    %1088 = vmatpush.msra.mxu0 0.0
    %1089 = vmatpush.msra.mxu0 0.0
    %1090 = vmatpush.msra.mxu0 0.0
    %1091 = vmatpush.msra.mxu0 0.0
    %1092 = vmatpush.msra.mxu0 0.0
    %1093 = vmatpush.msra.mxu0 0.0
    %1094 = vmatpush.msra.mxu0 0.0
    %1095 = vmatpush.msra.mxu0 0.0
    %1096 = vmatpush.msra.mxu0 0.0
    %1097 = vmatpush.msra.mxu0 0.0
    %1098 = vmatpush.msra.mxu0 0.0
    %1099 = vmatpush.msra.mxu0 0.0
    %1100 = vmatpush.msra.mxu0 0.0
    %1101 = vmatpush.msra.mxu0 0.0
    %1102 = vmatpush.msra.mxu0 %v633
    %1103 = vmatmul.f32.gmra.mxu0 %v1085
    %v1104 = vpop.f32.mrf.mxu0
    %v1105 = vadd.f32 0.0, %v1104
    %1106 = vdwg.mxu0
    %v1108 = vsel %vm695, %v989, 0
    %1110 = vmatpush.msra.mxu0 0.0
    %1111 = vmatpush.msra.mxu0 0.0
    %1112 = vmatpush.msra.mxu0 0.0
    %1113 = vmatpush.msra.mxu0 0.0
    %1114 = vmatpush.msra.mxu0 0.0
    %1115 = vmatpush.msra.mxu0 0.0
    %1116 = vmatpush.msra.mxu0 0.0
    %1117 = vmatpush.msra.mxu0 0.0
    %1118 = vmatpush.msra.mxu0 0.0
    %1119 = vmatpush.msra.mxu0 0.0
    %1120 = vmatpush.msra.mxu0 0.0
    %1121 = vmatpush.msra.mxu0 0.0
    %1122 = vmatpush.msra.mxu0 0.0
    %1123 = vmatpush.msra.mxu0 0.0
    %1124 = vmatpush.msra.mxu0 0.0
    %1125 = vmatpush.msra.mxu0 %v653
    %1126 = vmatmul.f32.gmra.mxu0 %v1108
    %v1127 = vpop.f32.mrf.mxu0
    %v1128 = vadd.f32 0.0, %v1127
    %1129 = vdwg.mxu0
    %v1131 = vsel %vm695, %v990, 0
    %1133 = vmatpush.msra.mxu0 0.0
    %1134 = vmatpush.msra.mxu0 0.0
    %1135 = vmatpush.msra.mxu0 0.0
    %1136 = vmatpush.msra.mxu0 0.0
    %1137 = vmatpush.msra.mxu0 0.0
    %1138 = vmatpush.msra.mxu0 0.0
    %1139 = vmatpush.msra.mxu0 0.0
    %1140 = vmatpush.msra.mxu0 0.0
    %1141 = vmatpush.msra.mxu0 0.0
    %1142 = vmatpush.msra.mxu0 0.0
    %1143 = vmatpush.msra.mxu0 0.0
    %1144 = vmatpush.msra.mxu0 0.0
    %1145 = vmatpush.msra.mxu0 0.0
    %1146 = vmatpush.msra.mxu0 0.0
    %1147 = vmatpush.msra.mxu0 0.0
    %1148 = vmatpush.msra.mxu0 %v673
    %1149 = vmatmul.f32.gmra.mxu0 %v1131
    %v1150 = vpop.f32.mrf.mxu0
    %v1151 = vadd.f32 0.0, %v1150
    %1152 = vdwg.mxu0
    %v1154 = vsel %vm695, %v991, 0
    %1156 = vmatpush.msra.mxu0 0.0
    %1157 = vmatpush.msra.mxu0 0.0
    %1158 = vmatpush.msra.mxu0 0.0
    %1159 = vmatpush.msra.mxu0 0.0
    %1160 = vmatpush.msra.mxu0 0.0
    %1161 = vmatpush.msra.mxu0 0.0
    %1162 = vmatpush.msra.mxu0 0.0
    %1163 = vmatpush.msra.mxu0 0.0
    %1164 = vmatpush.msra.mxu0 0.0
    %1165 = vmatpush.msra.mxu0 0.0
    %1166 = vmatpush.msra.mxu0 0.0
    %1167 = vmatpush.msra.mxu0 0.0
    %1168 = vmatpush.msra.mxu0 0.0
    %1169 = vmatpush.msra.mxu0 0.0
    %1170 = vmatpush.msra.mxu0 0.0
    %1171 = vmatpush.msra.mxu0 %v693
    %1172 = vmatmul.f32.gmra.mxu0 %v1154
    %v1173 = vpop.f32.mrf.mxu0
    %v1174 = vadd.f32 0.0, %v1173
    %1175 = vdwg.mxu0
    %v1176 = vld [vmem:[%s8] sm:$0xff]
    %v1177 = vld [vmem:[%s8 + $0x8] sm:$0xff]
    %v1178 = vld [vmem:[%s8 + $0x10] sm:$0xff]
    %v1179 = vld [vmem:[%s8 + $0x18] sm:$0xff]
    %v1180 = vld [vmem:[%s8 + $0x20] sm:$0xff]
    %v1181 = vld [vmem:[%s8 + $0x28] sm:$0xff]
    %v1182 = vld [vmem:[%s8 + $0x30] sm:$0xff]
    %v1183 = vld [vmem:[%s8 + $0x38] sm:$0xff]
    %v1185 = vsel %vm695, %v1013, 0
    %1187 = vmatpush.msra.mxu0 0.0
    %1188 = vmatpush.msra.mxu0 0.0
    %1189 = vmatpush.msra.mxu0 0.0
    %1190 = vmatpush.msra.mxu0 0.0
    %1191 = vmatpush.msra.mxu0 0.0
    %1192 = vmatpush.msra.mxu0 0.0
    %1193 = vmatpush.msra.mxu0 0.0
    %1194 = vmatpush.msra.mxu0 0.0
    %1195 = vmatpush.msra.mxu0 0.0
    %1196 = vmatpush.msra.mxu0 0.0
    %1197 = vmatpush.msra.mxu0 0.0
    %1198 = vmatpush.msra.mxu0 0.0
    %1199 = vmatpush.msra.mxu0 0.0
    %1200 = vmatpush.msra.mxu0 0.0
    %1201 = vmatpush.msra.mxu0 0.0
    %1202 = vmatpush.msra.mxu0 %v1176
    %1203 = vmatmul.f32.gmra.mxu0 %v1185
    %v1204 = vpop.f32.mrf.mxu0
    %v1205 = vadd.f32 0.0, %v1204
    %1206 = vdwg.mxu0
    %v1208 = vsel %vm695, %v1036, 0
    %1210 = vmatpush.msra.mxu0 0.0
    %1211 = vmatpush.msra.mxu0 0.0
    %1212 = vmatpush.msra.mxu0 0.0
    %1213 = vmatpush.msra.mxu0 0.0
    %1214 = vmatpush.msra.mxu0 0.0
    %1215 = vmatpush.msra.mxu0 0.0
    %1216 = vmatpush.msra.mxu0 0.0
    %1217 = vmatpush.msra.mxu0 0.0
    %1218 = vmatpush.msra.mxu0 0.0
    %1219 = vmatpush.msra.mxu0 0.0
    %1220 = vmatpush.msra.mxu0 0.0
    %1221 = vmatpush.msra.mxu0 0.0
    %1222 = vmatpush.msra.mxu0 0.0
    %1223 = vmatpush.msra.mxu0 0.0
    %1224 = vmatpush.msra.mxu0 0.0
    %1225 = vmatpush.msra.mxu0 %v1177
    %1226 = vmatmul.f32.gmra.mxu0 %v1208
    %v1227 = vpop.f32.mrf.mxu0
    %v1228 = vadd.f32 0.0, %v1227
    %1229 = vdwg.mxu0
    %v1231 = vsel %vm695, %v1059, 0
    %1233 = vmatpush.msra.mxu0 0.0
    %1234 = vmatpush.msra.mxu0 0.0
    %1235 = vmatpush.msra.mxu0 0.0
    %1236 = vmatpush.msra.mxu0 0.0
    %1237 = vmatpush.msra.mxu0 0.0
    %1238 = vmatpush.msra.mxu0 0.0
    %1239 = vmatpush.msra.mxu0 0.0
    %1240 = vmatpush.msra.mxu0 0.0
    %1241 = vmatpush.msra.mxu0 0.0
    %1242 = vmatpush.msra.mxu0 0.0
    %1243 = vmatpush.msra.mxu0 0.0
    %1244 = vmatpush.msra.mxu0 0.0
    %1245 = vmatpush.msra.mxu0 0.0
    %1246 = vmatpush.msra.mxu0 0.0
    %1247 = vmatpush.msra.mxu0 0.0
    %1248 = vmatpush.msra.mxu0 %v1178
    %1249 = vmatmul.f32.gmra.mxu0 %v1231
    %v1250 = vpop.f32.mrf.mxu0
    %v1251 = vadd.f32 0.0, %v1250
    %1252 = vdwg.mxu0
    %v1254 = vsel %vm695, %v1082, 0
    %1256 = vmatpush.msra.mxu0 0.0
    %1257 = vmatpush.msra.mxu0 0.0
    %1258 = vmatpush.msra.mxu0 0.0
    %1259 = vmatpush.msra.mxu0 0.0
    %1260 = vmatpush.msra.mxu0 0.0
    %1261 = vmatpush.msra.mxu0 0.0
    %1262 = vmatpush.msra.mxu0 0.0
    %1263 = vmatpush.msra.mxu0 0.0
    %1264 = vmatpush.msra.mxu0 0.0
    %1265 = vmatpush.msra.mxu0 0.0
    %1266 = vmatpush.msra.mxu0 0.0
    %1267 = vmatpush.msra.mxu0 0.0
    %1268 = vmatpush.msra.mxu0 0.0
    %1269 = vmatpush.msra.mxu0 0.0
    %1270 = vmatpush.msra.mxu0 0.0
    %1271 = vmatpush.msra.mxu0 %v1179
    %1272 = vmatmul.f32.gmra.mxu0 %v1254
    %v1273 = vpop.f32.mrf.mxu0
    %v1274 = vadd.f32 0.0, %v1273
    %1275 = vdwg.mxu0
    %v1277 = vsel %vm695, %v1105, 0
    %1279 = vmatpush.msra.mxu0 0.0
    %1280 = vmatpush.msra.mxu0 0.0
    %1281 = vmatpush.msra.mxu0 0.0
    %1282 = vmatpush.msra.mxu0 0.0
    %1283 = vmatpush.msra.mxu0 0.0
    %1284 = vmatpush.msra.mxu0 0.0
    %1285 = vmatpush.msra.mxu0 0.0
    %1286 = vmatpush.msra.mxu0 0.0
    %1287 = vmatpush.msra.mxu0 0.0
    %1288 = vmatpush.msra.mxu0 0.0
    %1289 = vmatpush.msra.mxu0 0.0
    %1290 = vmatpush.msra.mxu0 0.0
    %1291 = vmatpush.msra.mxu0 0.0
    %1292 = vmatpush.msra.mxu0 0.0
    %1293 = vmatpush.msra.mxu0 0.0
    %1294 = vmatpush.msra.mxu0 %v1180
    %1295 = vmatmul.f32.gmra.mxu0 %v1277
    %v1296 = vpop.f32.mrf.mxu0
    %v1297 = vadd.f32 0.0, %v1296
    %1298 = vdwg.mxu0
    %v1300 = vsel %vm695, %v1128, 0
    %1302 = vmatpush.msra.mxu0 0.0
    %1303 = vmatpush.msra.mxu0 0.0
    %1304 = vmatpush.msra.mxu0 0.0
    %1305 = vmatpush.msra.mxu0 0.0
    %1306 = vmatpush.msra.mxu0 0.0
    %1307 = vmatpush.msra.mxu0 0.0
    %1308 = vmatpush.msra.mxu0 0.0
    %1309 = vmatpush.msra.mxu0 0.0
    %1310 = vmatpush.msra.mxu0 0.0
    %1311 = vmatpush.msra.mxu0 0.0
    %1312 = vmatpush.msra.mxu0 0.0
    %1313 = vmatpush.msra.mxu0 0.0
    %1314 = vmatpush.msra.mxu0 0.0
    %1315 = vmatpush.msra.mxu0 0.0
    %1316 = vmatpush.msra.mxu0 0.0
    %1317 = vmatpush.msra.mxu0 %v1181
    %1318 = vmatmul.f32.gmra.mxu0 %v1300
    %v1319 = vpop.f32.mrf.mxu0
    %v1320 = vadd.f32 0.0, %v1319
    %1321 = vdwg.mxu0
    %v1323 = vsel %vm695, %v1151, 0
    %1325 = vmatpush.msra.mxu0 0.0
    %1326 = vmatpush.msra.mxu0 0.0
    %1327 = vmatpush.msra.mxu0 0.0
    %1328 = vmatpush.msra.mxu0 0.0
    %1329 = vmatpush.msra.mxu0 0.0
    %1330 = vmatpush.msra.mxu0 0.0
    %1331 = vmatpush.msra.mxu0 0.0
    %1332 = vmatpush.msra.mxu0 0.0
    %1333 = vmatpush.msra.mxu0 0.0
    %1334 = vmatpush.msra.mxu0 0.0
    %1335 = vmatpush.msra.mxu0 0.0
    %1336 = vmatpush.msra.mxu0 0.0
    %1337 = vmatpush.msra.mxu0 0.0
    %1338 = vmatpush.msra.mxu0 0.0
    %1339 = vmatpush.msra.mxu0 0.0
    %1340 = vmatpush.msra.mxu0 %v1182
    %1341 = vmatmul.f32.gmra.mxu0 %v1323
    %v1342 = vpop.f32.mrf.mxu0
    %v1343 = vadd.f32 0.0, %v1342
    %1344 = vdwg.mxu0
    %v1346 = vsel %vm695, %v1174, 0
    %1348 = vmatpush.msra.mxu0 0.0
    %1349 = vmatpush.msra.mxu0 0.0
    %1350 = vmatpush.msra.mxu0 0.0
    %1351 = vmatpush.msra.mxu0 0.0
    %1352 = vmatpush.msra.mxu0 0.0
    %1353 = vmatpush.msra.mxu0 0.0
    %1354 = vmatpush.msra.mxu0 0.0
    %1355 = vmatpush.msra.mxu0 0.0
    %1356 = vmatpush.msra.mxu0 0.0
    %1357 = vmatpush.msra.mxu0 0.0
    %1358 = vmatpush.msra.mxu0 0.0
    %1359 = vmatpush.msra.mxu0 0.0
    %1360 = vmatpush.msra.mxu0 0.0
    %1361 = vmatpush.msra.mxu0 0.0
    %1362 = vmatpush.msra.mxu0 0.0
    %1363 = vmatpush.msra.mxu0 %v1183
    %1364 = vmatmul.f32.gmra.mxu0 %v1346
    %v1365 = vpop.f32.mrf.mxu0
    %v1366 = vadd.f32 0.0, %v1365
    %1367 = vdwg.mxu0
    %v1368 = vadd.f32 %v1205, %v1228
    %v1369 = vadd.f32 %v1368, %v1251
    %v1370 = vadd.f32 %v1369, %v1274
    %v1371 = vadd.f32 %v1297, %v1320
    %v1372 = vadd.f32 %v1371, %v1343
    %v1373 = vadd.f32 %v1372, %v1366
    %v1374 = vld [vmem:[%s9] sm:$0x1]
    %v1376 = vperm.slane %v1374, 0
    %v1378 = vadd.f32 %v1370, %v1376
    %v1379 = vadd.f32 %v1373, %v1376
    %v1380 = vadd.f32 %v60, %v1378
    %v1381 = vadd.f32 %v61, %v1379
    %v1382 = vsel %vm110, %v1380, 0.0
    %1383 = vadd.xlane.f32.xlu0 %v1382
    %v1384 = vpop.xlane.xlu0 %1383
    %v1385 = vsel %vm110, %v1381, 0.0
    %1386 = vadd.xlane.f32.xlu0 %v1385
    %v1387 = vpop.xlane.xlu0 %1386
    %v1388 = vrcp.pop 32.0
    %v1389 = vmul.f32 32.0, %v1388
    %v1390 = vsub.f32 1.0, %v1389
    %v1391 = vmul.f32 %v1388, %v1390
    %v1392 = vadd.f32 %v1388, %v1391
    %vm1393 = vweird.f32 %v1388
    %v1394 = vsel %vm1393, %v1388, %v1392
    %v1395 = vmul.f32 %v1384, %v1394
    %v1396 = vmul.f32 %v1387, %v1394
    %v1397 = vsub.f32 %v1380, %v1395
    %v1398 = vsub.f32 %v1381, %v1396
    %v1399 = vmul.f32 %v1397, %v1397
    %v1400 = vmul.f32 %v1398, %v1398
    %v1401 = vsel %vm110, %v1399, 0.0
    %1402 = vadd.xlane.f32.xlu0 %v1401
    %v1403 = vpop.xlane.xlu0 %1402
    %v1404 = vsel %vm110, %v1400, 0.0
    %1405 = vadd.xlane.f32.xlu0 %v1404
    %v1406 = vpop.xlane.xlu0 %1405
    %v1407 = vmul.f32 %v1403, %v1394
    %v1408 = vmul.f32 %v1406, %v1394
    %v1409 = vadd.f32 %v1407, 1e-05
    %v1410 = vadd.f32 %v1408, 1e-05
    %v1411 = vrsqrt.pop %v1409
    %v1412 = vmul.f32 %v1411, %v1409
    %v1413 = vmul.f32 %v1412, %v1411
    %v1414 = vmul.f32 0.5, %v1413
    %v1415 = vsub.f32 1.5, %v1414
    %v1416 = vmul.f32 %v1411, %v1415
    %vm1417 = vweird.f32 %v1409
    %vm1418 = vweird.f32 %v1411
    %vm1419 = vmor %vm1417, %vm1418
    %v1420 = vsel %vm1419, %v1411, %v1416
    %v1421 = vrsqrt.pop %v1410
    %v1422 = vmul.f32 %v1421, %v1410
    %v1423 = vmul.f32 %v1422, %v1421
    %v1424 = vmul.f32 0.5, %v1423
    %v1425 = vsub.f32 1.5, %v1424
    %v1426 = vmul.f32 %v1421, %v1425
    %vm1427 = vweird.f32 %v1410
    %vm1428 = vweird.f32 %v1421
    %vm1429 = vmor %vm1427, %vm1428
    %v1430 = vsel %vm1429, %v1421, %v1426
    %v1431 = vmul.f32 %v1397, %v1420
    %v1432 = vmul.f32 %v1398, %v1430
    %v1433 = vld [vmem:[%s10] sm:$0x1]
    %v1435 = vperm.slane %v1433, 0
    %v1437 = vmul.f32 %v1431, %v1435
    %v1438 = vmul.f32 %v1432, %v1435
    %v1439 = vld [vmem:[%s11] sm:$0x1]
    %v1441 = vperm.slane %v1439, 0
    %v1443 = vadd.f32 %v1437, %v1441
    %v1444 = vadd.f32 %v1438, %v1441
    %v1445 = vld [vmem:[%s12] sm:$0xff]
    %v1446 = vld [vmem:[%s12 + $0x8] sm:$0xff]
    %v1447 = vld [vmem:[%s12 + $0x10] sm:$0xff]
    %v1448 = vld [vmem:[%s12 + $0x18] sm:$0xff]
    %v1449 = vld [vmem:[%s13] sm:$0x1]
    %v1451 = vperm.slane %v1449, 0
    %v1454 = vsel %vm110, %v1443, 0
    %v1457 = vsel %vm110, %v1444, 0
    %1459 = vmatpush.msra.mxu0 0.0
    %1460 = vmatpush.msra.mxu0 0.0
    %1461 = vmatpush.msra.mxu0 0.0
    %1462 = vmatpush.msra.mxu0 0.0
    %1463 = vmatpush.msra.mxu0 0.0
    %1464 = vmatpush.msra.mxu0 0.0
    %1465 = vmatpush.msra.mxu0 0.0
    %1466 = vmatpush.msra.mxu0 0.0
    %1467 = vmatpush.msra.mxu0 0.0
    %1468 = vmatpush.msra.mxu0 0.0
    %1469 = vmatpush.msra.mxu0 0.0
    %1470 = vmatpush.msra.mxu0 0.0
    %1471 = vmatpush.msra.mxu0 %v1448
    %1472 = vmatpush.msra.mxu0 %v1447
    %1473 = vmatpush.msra.mxu0 %v1446
    %1474 = vmatpush.msra.mxu0 %v1445
    %1475 = vmatmul.f32.gmra.mxu0 %v1454
    %v1476 = vpop.f32.mrf.mxu0
    %v1477 = vadd.f32 %v1451, %v1476
    %1478 = vmatmul.f32.gmra.mxu0 %v1457
    %v1479 = vpop.f32.mrf.mxu0
    %v1480 = vadd.f32 %v1451, %v1479
    %1481 = vdwg.mxu0
    %v1482 = vmax.f32 %v1477, 0.0
    %v1483 = vmax.f32 %v1480, 0.0
    %v1484 = vld [vmem:[%s14] sm:$0xff]
    %v1485 = vld [vmem:[%s14 + $0x8] sm:$0xff]
    %v1486 = vld [vmem:[%s14 + $0x10] sm:$0xff]
    %v1487 = vld [vmem:[%s14 + $0x18] sm:$0xff]
    %v1488 = vld [vmem:[%s14 + $0x20] sm:$0xff]
    %v1489 = vld [vmem:[%s14 + $0x28] sm:$0xff]
    %v1490 = vld [vmem:[%s14 + $0x30] sm:$0xff]
    %v1491 = vld [vmem:[%s14 + $0x38] sm:$0xff]
    %v1492 = vld [vmem:[%s15] sm:$0x1]
    %v1494 = vperm.slane %v1492, 0
    %vm1496 = vcmask 523264
    %v1498 = vsel %vm1496, %v1482, 0
    %v1501 = vsel %vm1496, %v1483, 0
    %1503 = vmatpush.msra.mxu0 0.0
    %1504 = vmatpush.msra.mxu0 0.0
    %1505 = vmatpush.msra.mxu0 0.0
    %1506 = vmatpush.msra.mxu0 0.0
    %1507 = vmatpush.msra.mxu0 0.0
    %1508 = vmatpush.msra.mxu0 0.0
    %1509 = vmatpush.msra.mxu0 0.0
    %1510 = vmatpush.msra.mxu0 0.0
    %1511 = vmatpush.msra.mxu0 %v1491
    %1512 = vmatpush.msra.mxu0 %v1490
    %1513 = vmatpush.msra.mxu0 %v1489
    %1514 = vmatpush.msra.mxu0 %v1488
    %1515 = vmatpush.msra.mxu0 %v1487
    %1516 = vmatpush.msra.mxu0 %v1486
    %1517 = vmatpush.msra.mxu0 %v1485
    %1518 = vmatpush.msra.mxu0 %v1484
    %1519 = vmatmul.f32.gmra.mxu0 %v1498
    %v1520 = vpop.f32.mrf.mxu0
    %v1521 = vadd.f32 %v1494, %v1520
    %1522 = vmatmul.f32.gmra.mxu0 %v1501
    %v1523 = vpop.f32.mrf.mxu0
    %v1524 = vadd.f32 %v1494, %v1523
    %1525 = vdwg.mxu0
    %v1526 = vadd.f32 %v1443, %v1521
    %v1527 = vadd.f32 %v1444, %v1524
    %v1528 = vsel %vm110, %v1526, 0.0
    %1529 = vadd.xlane.f32.xlu0 %v1528
    %v1530 = vpop.xlane.xlu0 %1529
    %v1531 = vsel %vm110, %v1527, 0.0
    %1532 = vadd.xlane.f32.xlu0 %v1531
    %v1533 = vpop.xlane.xlu0 %1532
    %v1534 = vmul.f32 %v1530, %v1394
    %v1535 = vmul.f32 %v1533, %v1394
    %v1536 = vsub.f32 %v1526, %v1534
    %v1537 = vsub.f32 %v1527, %v1535
    %v1538 = vmul.f32 %v1536, %v1536
    %v1539 = vmul.f32 %v1537, %v1537
    %v1540 = vsel %vm110, %v1538, 0.0
    %1541 = vadd.xlane.f32.xlu0 %v1540
    %v1542 = vpop.xlane.xlu0 %1541
    %v1543 = vsel %vm110, %v1539, 0.0
    %1544 = vadd.xlane.f32.xlu0 %v1543
    %v1545 = vpop.xlane.xlu0 %1544
    %v1546 = vmul.f32 %v1542, %v1394
    %v1547 = vmul.f32 %v1545, %v1394
    %v1548 = vadd.f32 %v1546, 1e-05
    %v1549 = vadd.f32 %v1547, 1e-05
    %v1550 = vrsqrt.pop %v1548
    %v1551 = vmul.f32 %v1550, %v1548
    %v1552 = vmul.f32 %v1551, %v1550
    %v1553 = vmul.f32 0.5, %v1552
    %v1554 = vsub.f32 1.5, %v1553
    %v1555 = vmul.f32 %v1550, %v1554
    %vm1556 = vweird.f32 %v1548
    %vm1557 = vweird.f32 %v1550
    %vm1558 = vmor %vm1556, %vm1557
    %v1559 = vsel %vm1558, %v1550, %v1555
    %v1560 = vrsqrt.pop %v1549
    %v1561 = vmul.f32 %v1560, %v1549
    %v1562 = vmul.f32 %v1561, %v1560
    %v1563 = vmul.f32 0.5, %v1562
    %v1564 = vsub.f32 1.5, %v1563
    %v1565 = vmul.f32 %v1560, %v1564
    %vm1566 = vweird.f32 %v1549
    %vm1567 = vweird.f32 %v1560
    %vm1568 = vmor %vm1566, %vm1567
    %v1569 = vsel %vm1568, %v1560, %v1565
    %v1570 = vmul.f32 %v1536, %v1559
    %v1571 = vmul.f32 %v1537, %v1569
    %v1572 = vld [vmem:[%s16] sm:$0x1]
    %v1574 = vperm.slane %v1572, 0
    %v1576 = vmul.f32 %v1570, %v1574
    %v1577 = vmul.f32 %v1571, %v1574
    %v1578 = vld [vmem:[%s17] sm:$0x1]
    %v1580 = vperm.slane %v1578, 0
    %v1582 = vadd.f32 %v1576, %v1580
    %v1583 = vadd.f32 %v1577, %v1580
    %1584 = vst.msk [vmem:[#allocation2] sm:$0xff] %vm110, %v1582
    %1585 = vst.msk [vmem:[#allocation2 + $0x8] sm:$0xff] %vm110, %v1583
    // Predicated region
    $region74: #{tpu_custom_call.1} parent=1 // pred_check
      _
    $region75: #{tpu_custom_call.1} parent=1 // pred_check_branch
      %1587 = sbr.rel (0) target = $region77
    $region76: #{tpu_custom_call.1} parent=1 // pred_region
      %1589 = vsyncadd [#allocation3], 0
      %s1590 = sshll.u32 [#allocation2], 4
      %s1591 = int_to_ptr.vmem [resolvable:$true] %s1590
      %s1592 = sshll.u32 %s18, 4
      %s1593 = int_to_ptr.hbm [resolvable:$true] %s1592
      %1598 = dma.vmem_to_hbm [thread:$0]  %s1591, 256, %s1593, [#allocation3], 128, 128, 8
    $region77: #{tpu_custom_call.1} parent=1 // pred_fallthru
      _
    // Predicated region
    $region78: #{tpu_custom_call.1} parent=1 // pred_check
      _
    $region79: #{tpu_custom_call.1} parent=1 // pred_check_branch
      %1600 = sbr.rel (0) target = $region81
    $region80: #{tpu_custom_call.1} parent=1 // pred_region
      %1602 = dma.done [#allocation3], 256
    $region81: #{tpu_custom_call.1} parent=1 // pred_fallthru
      _
    %1603 = vsyncpa [#allocation3], 1

</llo_original>
